<compile_context>
chip_gen: v5e
topology: v5e:2x2
jax: 0.10.0
libtpu: 0.0.40
codegen_flags: <defaults>
</compile_context>

<pallas_src>
import functools

import numpy as np
import jax
import jax.numpy as jnp
from jax import lax
from jax.experimental import pallas as pl
from jax.experimental.pallas import tpu as pltpu


# ---------------------------------------------------------------------------
# Kernel 1 (tiny, one shot): per-batch modulated conv weights
#   modw[b, o, c] = w[o, c] * (style[b] @ waff_t + baff)[c]   (demodulate=False)
# ---------------------------------------------------------------------------
def _modulate_kernel(batch, style_ref, waff_ref, baff_ref, w_ref, modw_ref):
    s = jnp.dot(style_ref[...], waff_ref[...],
                preferred_element_type=jnp.float32) + baff_ref[...]   # (B, Cin)
    w = w_ref[...]                                                    # (3, Cin)
    for b in range(batch):                                            # B is small/static
        modw_ref[b] = w * s[b:b + 1, :]


# ---------------------------------------------------------------------------
# Kernel 2a: modulated 1x1 conv + bias (no skip)
#   x block is (1, Cin, TH*W) flat -> one lane-dense (3, TH*W) store.
# ---------------------------------------------------------------------------
def _torgb_kernel(modw_ref, bias_ref, x_ref, o_ref):
    o_ref[0] = (jnp.dot(modw_ref[0], x_ref[0],
                        preferred_element_type=jnp.float32) + bias_ref[...])


# ---------------------------------------------------------------------------
# Kernel 2b: fused modulated 1x1 conv + bias + upfirdn2d(up=2, pad=(2,1)) skip add
#
# The skip arrives as per-tile zero-padded windows, row-major:
#   skw block: (1, THs+2, 3, Ws+2)   with THs = TH//2, Ws = W//2
# Horizontal upsample+filter of each padded skip row is a small matmul with a
# constant (Ws+2, W) polyphase matrix `mw`; the vertical direction is a 2-tap
# polyphase combine added row-chunk by row-chunk into the already-stored
# lane-dense conv tile (read-modify-write on o_ref).
#   y[2i]   = (1/8) s[i-1] + (3/8) s[i]
#   y[2i+1] = (3/8) s[i]   + (1/8) s[i+1]        (separately along H and W)
# ---------------------------------------------------------------------------
def _torgb_skip_kernel(tile_rows, width, modw_ref, bias_ref, mw_ref, x_ref,
                       skw_ref, o_ref):
    # conv + bias, single lane-dense store
    o_ref[0] = (jnp.dot(modw_ref[0], x_ref[0],
                        preferred_element_type=jnp.float32) + bias_ref[...])

    k0 = jnp.float32(1.0 / 8.0)
    k1 = jnp.float32(3.0 / 8.0)
    mw = mw_ref[...]                                     # (Ws+2, W)
    ths = tile_rows // 2

    # rolling window of horizontally-upsampled skip rows (each (3, W))
    row_a = jnp.dot(skw_ref[0, 0], mw, preferred_element_type=jnp.float32)
    row_b = jnp.dot(skw_ref[0, 1], mw, preferred_element_type=jnp.float32)
    for i in range(ths):
        row_c = jnp.dot(skw_ref[0, i + 2], mw,
                        preferred_element_type=jnp.float32)
        sl_even = pl.ds((2 * i) * width, width)
        sl_odd = pl.ds((2 * i + 1) * width, width)
        o_ref[0, :, sl_even] = o_ref[0, :, sl_even] + (k0 * row_a + k1 * row_b)
        o_ref[0, :, sl_odd] = o_ref[0, :, sl_odd] + (k1 * row_b + k0 * row_c)
        row_a, row_b = row_b, row_c


# ---------------------------------------------------------------------------
# Wrapper helpers
# ---------------------------------------------------------------------------
def _pick_tile_rows(H, W, Cin):
    """Largest row-tile whose double-buffered x+out blocks fit a ~12 MiB budget,
    even, dividing H, with TH*W a multiple of 128 (or TH == H)."""
    budget = 12 * 1024 * 1024
    per_row = 2 * (Cin + 3) * W * 4          # double-buffered x + out bytes / row
    th = max(2, min(H, budget // max(per_row, 1)))
    for cand in range(min(th, H), 1, -1):
        if H % cand == 0 and cand % 2 == 0 and (cand * W) % 128 == 0:
            return cand
    return H


def _upfir_width_matrix(W):
    """(Ws+2, W) matrix applying the horizontal up=2 / [1,3,3,1]/8 filter to a
    zero-padded skip row (padded by 1 on each side)."""
    Ws = W // 2
    Wp = Ws + 2
    k0, k1 = 1.0 / 8.0, 3.0 / 8.0
    m = np.zeros((Wp, W), np.float32)
    for n in range(W):
        j = n // 2
        if n % 2 == 0:
            m[j, n] += k0
            m[j + 1, n] += k1
        else:
            m[j + 1, n] += k1
            m[j + 2, n] += k0
    return jnp.asarray(m)


def _build_skip_windows(skip, tile_rows):
    """Per-row-tile zero-padded skip windows: (B, T*(THs+2), 3, Ws+2).
    Window t holds padded skip rows [t*THs, t*THs + THs + 2). Quarter-resolution
    data, so this XLA gather is cheap relative to the x traffic."""
    B, C, Hs, Ws = skip.shape
    ths = tile_rows // 2
    T = (2 * Hs) // tile_rows
    sp = jnp.pad(skip, ((0, 0), (0, 0), (1, 1), (1, 1)))            # (B,3,Hs+2,Ws+2)
    row_idx = jnp.arange(T)[:, None] * ths + jnp.arange(ths + 2)[None, :]
    win = jnp.take(sp, row_idx, axis=2)                             # (B,3,T,THs+2,Ws+2)
    win = jnp.transpose(win, (0, 2, 3, 1, 4))                       # (B,T,THs+2,3,Ws+2)
    return win.reshape(B, T * (ths + 2), C, Ws + 2).astype(jnp.float32)


# ---------------------------------------------------------------------------
# Forward
# ---------------------------------------------------------------------------
def to_rgb_forward(x, style, params, skip=None, tile_rows=None):
    B, Cin, H, W = x.shape
    S = style.shape[1]
    HW = H * W

    if tile_rows is None:
        TH = _pick_tile_rows(H, W, Cin)
    else:
        TH = int(tile_rows)
        assert H % TH == 0 and ((TH * W) % 128 == 0 or TH == H)
    if skip is not None:
        assert skip.shape == (B, 3, H // 2, W // 2) and TH % 2 == 0
    T = H // TH

    # 1) hoisted modulation: modw[b] = w * affine(style[b])          (B, 3, Cin)
    modw = pl.pallas_call(
        functools.partial(_modulate_kernel, B),
        out_shape=jax.ShapeDtypeStruct((B, 3, Cin), jnp.float32),
        grid=(1,),
        in_specs=[
            pl.BlockSpec((B, S), lambda i: (0, 0)),
            pl.BlockSpec((S, Cin), lambda i: (0, 0)),
            pl.BlockSpec((1, Cin), lambda i: (0, 0)),
            pl.BlockSpec((3, Cin), lambda i: (0, 0)),
        ],
        out_specs=pl.BlockSpec((B, 3, Cin), lambda i: (0, 0, 0)),
    )(style, params["waff_t"], params["baff"], params["w"])

    x_flat = x.reshape(B, Cin, HW)          # free (contiguous) reshape
    cparams = pltpu.CompilerParams(
        dimension_semantics=("parallel", "parallel"),
        vmem_limit_bytes=32 * 1024 * 1024)

    if skip is None:
        out_flat = pl.pallas_call(
            _torgb_kernel,
            out_shape=jax.ShapeDtypeStruct((B, 3, HW), jnp.float32),
            grid=(B, T),
            in_specs=[
                pl.BlockSpec((1, 3, Cin), lambda b, t: (b, 0, 0)),       # modw
                pl.BlockSpec((3, 1), lambda b, t: (0, 0)),               # bias
                pl.BlockSpec((1, Cin, TH * W), lambda b, t: (b, 0, t)),  # x
            ],
            out_specs=pl.BlockSpec((1, 3, TH * W), lambda b, t: (b, 0, t)),
            compiler_params=cparams,
        )(modw, params["bias"], x_flat)
    else:
        THs = TH // 2
        Wp = W // 2 + 2
        skw = _build_skip_windows(skip, TH)          # (B, T*(THs+2), 3, Wp)
        mw = _upfir_width_matrix(W)                  # (Wp, W), constant
        out_flat = pl.pallas_call(
            functools.partial(_torgb_skip_kernel, TH, W),
            out_shape=jax.ShapeDtypeStruct((B, 3, HW), jnp.float32),
            grid=(B, T),
            in_specs=[
                pl.BlockSpec((1, 3, Cin), lambda b, t: (b, 0, 0)),       # modw
                pl.BlockSpec((3, 1), lambda b, t: (0, 0)),               # bias
                pl.BlockSpec((Wp, W), lambda b, t: (0, 0)),              # mw
                pl.BlockSpec((1, Cin, TH * W), lambda b, t: (b, 0, t)),  # x
                pl.BlockSpec((1, THs + 2, 3, Wp), lambda b, t: (b, t, 0, 0)),
            ],
            out_specs=pl.BlockSpec((1, 3, TH * W), lambda b, t: (b, 0, t)),
            compiler_params=cparams,
        )(modw, params["bias"], mw, x_flat, skw)

    return out_flat.reshape(B, 3, H, W)


# ---------------------------------------------------------------------------
# Deterministic parameter init (mirrors ToRGB.__init__ shapes)
# ---------------------------------------------------------------------------
def init_params(key, in_channels, style_dim):
    k1, k2 = jax.random.split(key)
    a = 0.2
    gain = (2.0 / (1.0 + a * a)) ** 0.5
    std = gain / (in_channels ** 0.5)
    w = jax.random.normal(k1, (3, in_channels), jnp.float32) * std
    waff = jax.random.normal(k2, (in_channels, style_dim), jnp.float32)
    scale = 1.0 / (style_dim ** 0.5)
    waff_t = (waff * scale).T                                   # (S, Cin)
    baff = jnp.ones((1, in_channels), jnp.float32)
    bias = jnp.zeros((3, 1), jnp.float32)
    return {"w": w, "waff_t": waff_t, "baff": baff, "bias": bias}


# ---------------------------------------------------------------------------
# Pure-JAX reference (PyTorch semantics) for validation
# ---------------------------------------------------------------------------
def reference(x, style, params, skip=None):
    hi = lax.Precision.HIGHEST
    s_mod = jnp.dot(style, params["waff_t"], precision=hi) + params["baff"]
    out = jnp.einsum("oc,bc,bchw->bohw", params["w"], s_mod, x, precision=hi)
    out = out + params["bias"].reshape(1, 3, 1, 1)
    if skip is not None:
        k1d = jnp.array([1.0, 3.0, 3.0, 1.0], jnp.float32)
        K = jnp.outer(k1d, k1d)
        K = K / jnp.sum(K)                     # no factor**2 (see header note)
        Kd = jnp.tile(K[None, None], (3, 1, 1, 1))
        up = lax.conv_general_dilated(
            skip, Kd, window_strides=(1, 1), padding=((2, 2), (2, 2)),
            lhs_dilation=(2, 2), dimension_numbers=("NCHW", "OIHW", "NCHW"),
            feature_group_count=3, precision=hi)
        out = out + up
    return out


if __name__ == "__main__":
    B, Cin, H, W, S = 2, 4, 16, 16, 32
    key = jax.random.PRNGKey(0)
    kx, ks, ksk, kp = jax.random.split(key, 4)
    x = jax.random.normal(kx, (B, Cin, H, W), jnp.float32)
    style = jax.random.normal(ks, (B, S), jnp.float32)
    skip = jax.random.normal(ksk, (B, 3, H // 2, W // 2), jnp.float32)
    params = init_params(kp, Cin, S)

    fwd = jax.jit(to_rgb_forward, static_argnames=("tile_rows",))

    # fused skip path (single row tile)
    out = jax.block_until_ready(fwd(x, style, params, skip))
    ref = reference(x, style, params, skip)
    assert out.shape == (B, 3, H, W), out.shape
    assert jnp.allclose(out, ref, rtol=1e-3, atol=1e-3), float(
        jnp.max(jnp.abs(out - ref)))

    # fused skip path, multi-tile spatial grid (2 tiles of 8 rows)
    out_t = jax.block_until_ready(fwd(x, style, params, skip, tile_rows=8))
    assert jnp.allclose(out_t, ref, rtol=1e-3, atol=1e-3), float(
        jnp.max(jnp.abs(out_t - ref)))

    # no-skip path (no zero 'up' tensor materialized or read)
    out_ns = jax.block_until_ready(fwd(x, style, params, None))
    ref_ns = reference(x, style, params, None)
    assert jnp.allclose(out_ns, ref_ns, rtol=1e-3, atol=1e-3), float(
        jnp.max(jnp.abs(out_ns - ref_ns)))

    print("KERNEL_OK")
</pallas_src>

<mosaic_0001>
module attributes {stable_mosaic.version = 11 : i64} {
  func.func @_modulate_kernel(%arg0: i32, %arg1: memref<2x32xf32, #tpu.memory_space<vmem>>, %arg2: memref<32x4xf32, #tpu.memory_space<vmem>>, %arg3: memref<1x4xf32, #tpu.memory_space<vmem>>, %arg4: memref<3x4xf32, #tpu.memory_space<vmem>>, %arg5: memref<2x3x4xf32, #tpu.memory_space<vmem>>) attributes {dimension_semantics = [#tpu.dimension_semantics<arbitrary>], iteration_bounds = array<i64: 1>, scalar_prefetch = 0 : i64, scratch_operands = 0 : i64, tpu.core_type = #tpu.core_type<tc>, window_params = [{pipeline_mode = #tpu.pipeline_mode<synchronous>, transform_indices = @transform_0, window_bounds = array<i64: 2, 32>}, {pipeline_mode = #tpu.pipeline_mode<synchronous>, transform_indices = @transform_1, window_bounds = array<i64: 32, 4>}, {pipeline_mode = #tpu.pipeline_mode<synchronous>, transform_indices = @transform_2, window_bounds = array<i64: 1, 4>}, {pipeline_mode = #tpu.pipeline_mode<synchronous>, transform_indices = @transform_3, window_bounds = array<i64: 3, 4>}, {pipeline_mode = #tpu.pipeline_mode<synchronous>, transform_indices = @transform_4, window_bounds = array<i64: 2, 3, 4>}]} {
    %c0 = arith.constant 0 : index
    %c0_0 = arith.constant 0 : index
    %0 = vector.load %arg1[%c0, %c0_0] : memref<2x32xf32, #tpu.memory_space<vmem>>, vector<2x32xf32>
    %c0_1 = arith.constant 0 : index
    %c0_2 = arith.constant 0 : index
    %1 = vector.load %arg2[%c0_1, %c0_2] : memref<32x4xf32, #tpu.memory_space<vmem>>, vector<32x4xf32>
    %cst = arith.constant dense<0.000000e+00> : vector<2x4xf32>
    %2 = tpu.matmul %0, %1, %cst {dimension_numbers = #tpu.dot_dimension_numbers<[1], [0], [0], [1], [0, 0, 1, 1], [], []>} : vector<2x32xf32>, vector<32x4xf32>, vector<2x4xf32> -> vector<2x4xf32>
    %c0_3 = arith.constant 0 : index
    %c0_4 = arith.constant 0 : index
    %3 = vector.load %arg3[%c0_3, %c0_4] : memref<1x4xf32, #tpu.memory_space<vmem>>, vector<1x4xf32>
    %4 = vector.broadcast %3 : vector<1x4xf32> to vector<2x4xf32>
    %5 = arith.addf %2, %4 : vector<2x4xf32>
    %c0_5 = arith.constant 0 : index
    %c0_6 = arith.constant 0 : index
    %6 = vector.load %arg4[%c0_5, %c0_6] : memref<3x4xf32, #tpu.memory_space<vmem>>, vector<3x4xf32>
    %7 = vector.extract_strided_slice %5 {offsets = [0, 0], sizes = [1, 4], strides = [1, 1]} : vector<2x4xf32> to vector<1x4xf32>
    %8 = vector.broadcast %7 : vector<1x4xf32> to vector<3x4xf32>
    %9 = arith.mulf %6, %8 : vector<3x4xf32>
    %c0_7 = arith.constant 0 : index
    %c0_8 = arith.constant 0 : index
    %c0_9 = arith.constant 0 : index
    %10 = vector.load %arg5[%c0_7, %c0_8, %c0_9] : memref<2x3x4xf32, #tpu.memory_space<vmem>>, vector<1x3x4xf32>
    %11 = vector.shape_cast %10 : vector<1x3x4xf32> to vector<3x4xf32>
    %12 = vector.shape_cast %9 : vector<3x4xf32> to vector<1x3x4xf32>
    tpu.vector_store %arg5[%c0_7, %c0_8, %c0_9], %12 {strides = array<i32>} : memref<2x3x4xf32, #tpu.memory_space<vmem>>, vector<1x3x4xf32>,
    %13 = vector.extract_strided_slice %5 {offsets = [1, 0], sizes = [1, 4], strides = [1, 1]} : vector<2x4xf32> to vector<1x4xf32>
    %14 = vector.broadcast %13 : vector<1x4xf32> to vector<3x4xf32>
    %15 = arith.mulf %6, %14 : vector<3x4xf32>
    %c1 = arith.constant 1 : index
    %c0_10 = arith.constant 0 : index
    %c0_11 = arith.constant 0 : index
    %16 = vector.load %arg5[%c1, %c0_10, %c0_11] : memref<2x3x4xf32, #tpu.memory_space<vmem>>, vector<1x3x4xf32>
    %17 = vector.shape_cast %16 : vector<1x3x4xf32> to vector<3x4xf32>
    %18 = vector.shape_cast %15 : vector<3x4xf32> to vector<1x3x4xf32>
    tpu.vector_store %arg5[%c1, %c0_10, %c0_11], %18 {strides = array<i32>} : memref<2x3x4xf32, #tpu.memory_space<vmem>>, vector<1x3x4xf32>,
    return
  }
  func.func @transform_0(%arg0: i32) -> (i32, i32) {
    %c0_i32 = arith.constant 0 : i32
    %c0_i32_0 = arith.constant 0 : i32
    %c0_i32_1 = arith.constant 0 : i32
    return %c0_i32, %c0_i32_0 : i32, i32
  }
  func.func @transform_1(%arg0: i32) -> (i32, i32) {
    %c0_i32 = arith.constant 0 : i32
    %c0_i32_0 = arith.constant 0 : i32
    %c0_i32_1 = arith.constant 0 : i32
    return %c0_i32, %c0_i32_0 : i32, i32
  }
  func.func @transform_2(%arg0: i32) -> (i32, i32) {
    %c0_i32 = arith.constant 0 : i32
    %c0_i32_0 = arith.constant 0 : i32
    %c0_i32_1 = arith.constant 0 : i32
    return %c0_i32, %c0_i32_0 : i32, i32
  }
  func.func @transform_3(%arg0: i32) -> (i32, i32) {
    %c0_i32 = arith.constant 0 : i32
    %c0_i32_0 = arith.constant 0 : i32
    %c0_i32_1 = arith.constant 0 : i32
    return %c0_i32, %c0_i32_0 : i32, i32
  }
  func.func @transform_4(%arg0: i32) -> (i32, i32, i32) {
    %c0_i32 = arith.constant 0 : i32
    %c0_i32_0 = arith.constant 0 : i32
    %c0_i32_1 = arith.constant 0 : i32
    %c0_i32_2 = arith.constant 0 : i32
    return %c0_i32, %c0_i32_0, %c0_i32_1 : i32, i32, i32
  }
}

module attributes {stable_mosaic.version = 11 : i64} {
  func.func @_torgb_skip_kernel(%arg0: i32, %arg1: i32, %arg2: memref<1x3x4xf32, #tpu.memory_space<vmem>>, %arg3: memref<3x1xf32, #tpu.memory_space<vmem>>, %arg4: memref<10x16xf32, #tpu.memory_space<vmem>>, %arg5: memref<1x4x256xf32, #tpu.memory_space<vmem>>, %arg6: memref<1x10x3x10xf32, #tpu.memory_space<vmem>>, %arg7: memref<1x3x256xf32, #tpu.memory_space<vmem>>) attributes {dimension_semantics = [#tpu.dimension_semantics<parallel>, #tpu.dimension_semantics<parallel>], iteration_bounds = array<i64: 2, 1>, scalar_prefetch = 0 : i64, scratch_operands = 0 : i64, tpu.core_type = #tpu.core_type<tc>, window_params = [{transform_indices = @transform_0, window_bounds = array<i64: 1, 3, 4>}, {pipeline_mode = #tpu.pipeline_mode<synchronous>, transform_indices = @transform_1, window_bounds = array<i64: 3, 1>}, {pipeline_mode = #tpu.pipeline_mode<synchronous>, transform_indices = @transform_2, window_bounds = array<i64: 10, 16>}, {transform_indices = @transform_3, window_bounds = array<i64: 1, 4, 256>}, {transform_indices = @transform_4, window_bounds = array<i64: 1, 10, 3, 10>}, {transform_indices = @transform_5, window_bounds = array<i64: 1, 3, 256>}]} {
    %c0 = arith.constant 0 : index
    %c0_0 = arith.constant 0 : index
    %c0_1 = arith.constant 0 : index
    %0 = vector.load %arg2[%c0, %c0_0, %c0_1] : memref<1x3x4xf32, #tpu.memory_space<vmem>>, vector<1x3x4xf32>
    %1 = vector.shape_cast %0 : vector<1x3x4xf32> to vector<3x4xf32>
    %c0_2 = arith.constant 0 : index
    %c0_3 = arith.constant 0 : index
    %c0_4 = arith.constant 0 : index
    %2 = vector.load %arg5[%c0_2, %c0_3, %c0_4] : memref<1x4x256xf32, #tpu.memory_space<vmem>>, vector<1x4x256xf32>
    %3 = vector.shape_cast %2 : vector<1x4x256xf32> to vector<4x256xf32>
    %cst = arith.constant dense<0.000000e+00> : vector<3x256xf32>
    %4 = tpu.matmul %1, %3, %cst {dimension_numbers = #tpu.dot_dimension_numbers<[1], [0], [0], [1], [0, 0, 1, 1], [], []>} : vector<3x4xf32>, vector<4x256xf32>, vector<3x256xf32> -> vector<3x256xf32>
    %c0_5 = arith.constant 0 : index
    %c0_6 = arith.constant 0 : index
    %5 = vector.load %arg3[%c0_5, %c0_6] : memref<3x1xf32, #tpu.memory_space<vmem>>, vector<3x1xf32>
    %6 = vector.broadcast %5 : vector<3x1xf32> to vector<3x256xf32>
    %7 = arith.addf %4, %6 : vector<3x256xf32>
    %c0_7 = arith.constant 0 : index
    %c0_8 = arith.constant 0 : index
    %c0_9 = arith.constant 0 : index
    %8 = vector.load %arg7[%c0_7, %c0_8, %c0_9] : memref<1x3x256xf32, #tpu.memory_space<vmem>>, vector<1x3x256xf32>
    %9 = vector.shape_cast %8 : vector<1x3x256xf32> to vector<3x256xf32>
    %10 = vector.shape_cast %7 : vector<3x256xf32> to vector<1x3x256xf32>
    tpu.vector_store %arg7[%c0_7, %c0_8, %c0_9], %10 {strides = array<i32>} : memref<1x3x256xf32, #tpu.memory_space<vmem>>, vector<1x3x256xf32>,
    %c0_10 = arith.constant 0 : index
    %c0_11 = arith.constant 0 : index
    %11 = vector.load %arg4[%c0_10, %c0_11] : memref<10x16xf32, #tpu.memory_space<vmem>>, vector<10x16xf32>
    %c0_12 = arith.constant 0 : index
    %c0_13 = arith.constant 0 : index
    %c0_14 = arith.constant 0 : index
    %c0_15 = arith.constant 0 : index
    %12 = vector.load %arg6[%c0_12, %c0_13, %c0_14, %c0_15] : memref<1x10x3x10xf32, #tpu.memory_space<vmem>>, vector<1x1x3x10xf32>
    %13 = vector.shape_cast %12 : vector<1x1x3x10xf32> to vector<3x10xf32>
    %cst_16 = arith.constant dense<0.000000e+00> : vector<3x16xf32>
    %14 = tpu.matmul %13, %11, %cst_16 {dimension_numbers = #tpu.dot_dimension_numbers<[1], [0], [0], [1], [0, 0, 1, 1], [], []>} : vector<3x10xf32>, vector<10x16xf32>, vector<3x16xf32> -> vector<3x16xf32>
    %c0_17 = arith.constant 0 : index
    %c1 = arith.constant 1 : index
    %c0_18 = arith.constant 0 : index
    %c0_19 = arith.constant 0 : index
    %15 = vector.load %arg6[%c0_17, %c1, %c0_18, %c0_19] : memref<1x10x3x10xf32, #tpu.memory_space<vmem>>, vector<1x1x3x10xf32>
    %16 = vector.shape_cast %15 : vector<1x1x3x10xf32> to vector<3x10xf32>
    %cst_20 = arith.constant dense<0.000000e+00> : vector<3x16xf32>
    %17 = tpu.matmul %16, %11, %cst_20 {dimension_numbers = #tpu.dot_dimension_numbers<[1], [0], [0], [1], [0, 0, 1, 1], [], []>} : vector<3x10xf32>, vector<10x16xf32>, vector<3x16xf32> -> vector<3x16xf32>
    %c0_21 = arith.constant 0 : index
    %c2 = arith.constant 2 : index
    %c0_22 = arith.constant 0 : index
    %c0_23 = arith.constant 0 : index
    %18 = vector.load %arg6[%c0_21, %c2, %c0_22, %c0_23] : memref<1x10x3x10xf32, #tpu.memory_space<vmem>>, vector<1x1x3x10xf32>
    %19 = vector.shape_cast %18 : vector<1x1x3x10xf32> to vector<3x10xf32>
    %cst_24 = arith.constant dense<0.000000e+00> : vector<3x16xf32>
    %20 = tpu.matmul %19, %11, %cst_24 {dimension_numbers = #tpu.dot_dimension_numbers<[1], [0], [0], [1], [0, 0, 1, 1], [], []>} : vector<3x10xf32>, vector<10x16xf32>, vector<3x16xf32> -> vector<3x16xf32>
    %c0_25 = arith.constant 0 : index
    %c0_26 = arith.constant 0 : index
    %c0_27 = arith.constant 0 : index
    %21 = vector.load %arg7[%c0_25, %c0_26, %c0_27] : memref<1x3x256xf32, #tpu.memory_space<vmem>>, vector<1x3x16xf32>
    %22 = vector.shape_cast %21 : vector<1x3x16xf32> to vector<3x16xf32>
    %cst_28 = arith.constant 1.250000e-01 : f32
    %23 = vector.broadcast %cst_28 : f32 to vector<3x16xf32>
    %24 = arith.mulf %23, %14 : vector<3x16xf32>
    %cst_29 = arith.constant 3.750000e-01 : f32
    %25 = vector.broadcast %cst_29 : f32 to vector<3x16xf32>
    %26 = arith.mulf %25, %17 : vector<3x16xf32>
    %27 = arith.addf %24, %26 : vector<3x16xf32>
    %28 = arith.addf %22, %27 : vector<3x16xf32>
    %c0_30 = arith.constant 0 : index
    %c0_31 = arith.constant 0 : index
    %c0_32 = arith.constant 0 : index
    %29 = vector.load %arg7[%c0_30, %c0_31, %c0_32] : memref<1x3x256xf32, #tpu.memory_space<vmem>>, vector<1x3x16xf32>
    %30 = vector.shape_cast %29 : vector<1x3x16xf32> to vector<3x16xf32>
    %31 = vector.shape_cast %28 : vector<3x16xf32> to vector<1x3x16xf32>
    tpu.vector_store %arg7[%c0_30, %c0_31, %c0_32], %31 {strides = array<i32>} : memref<1x3x256xf32, #tpu.memory_space<vmem>>, vector<1x3x16xf32>,
    %c0_33 = arith.constant 0 : index
    %c0_34 = arith.constant 0 : index
    %c16 = arith.constant 16 : index
    %32 = vector.load %arg7[%c0_33, %c0_34, %c16] : memref<1x3x256xf32, #tpu.memory_space<vmem>>, vector<1x3x16xf32>
    %33 = vector.shape_cast %32 : vector<1x3x16xf32> to vector<3x16xf32>
    %cst_35 = arith.constant 3.750000e-01 : f32
    %34 = vector.broadcast %cst_35 : f32 to vector<3x16xf32>
    %35 = arith.mulf %34, %17 : vector<3x16xf32>
    %cst_36 = arith.constant 1.250000e-01 : f32
    %36 = vector.broadcast %cst_36 : f32 to vector<3x16xf32>
    %37 = arith.mulf %36, %20 : vector<3x16xf32>
    %38 = arith.addf %35, %37 : vector<3x16xf32>
    %39 = arith.addf %33, %38 : vector<3x16xf32>
    %c0_37 = arith.constant 0 : index
    %c0_38 = arith.constant 0 : index
    %c16_39 = arith.constant 16 : index
    %40 = vector.load %arg7[%c0_37, %c0_38, %c16_39] : memref<1x3x256xf32, #tpu.memory_space<vmem>>, vector<1x3x16xf32>
    %41 = vector.shape_cast %40 : vector<1x3x16xf32> to vector<3x16xf32>
    %42 = vector.shape_cast %39 : vector<3x16xf32> to vector<1x3x16xf32>
    tpu.vector_store %arg7[%c0_37, %c0_38, %c16_39], %42 {strides = array<i32>} : memref<1x3x256xf32, #tpu.memory_space<vmem>>, vector<1x3x16xf32>,
    %c0_40 = arith.constant 0 : index
    %c3 = arith.constant 3 : index
    %c0_41 = arith.constant 0 : index
    %c0_42 = arith.constant 0 : index
    %43 = vector.load %arg6[%c0_40, %c3, %c0_41, %c0_42] : memref<1x10x3x10xf32, #tpu.memory_space<vmem>>, vector<1x1x3x10xf32>
    %44 = vector.shape_cast %43 : vector<1x1x3x10xf32> to vector<3x10xf32>
    %cst_43 = arith.constant dense<0.000000e+00> : vector<3x16xf32>
    %45 = tpu.matmul %44, %11, %cst_43 {dimension_numbers = #tpu.dot_dimension_numbers<[1], [0], [0], [1], [0, 0, 1, 1], [], []>} : vector<3x10xf32>, vector<10x16xf32>, vector<3x16xf32> -> vector<3x16xf32>
    %c0_44 = arith.constant 0 : index
    %c0_45 = arith.constant 0 : index
    %c32 = arith.constant 32 : index
    %46 = vector.load %arg7[%c0_44, %c0_45, %c32] : memref<1x3x256xf32, #tpu.memory_space<vmem>>, vector<1x3x16xf32>
    %47 = vector.shape_cast %46 : vector<1x3x16xf32> to vector<3x16xf32>
    %cst_46 = arith.constant 1.250000e-01 : f32
    %48 = vector.broadcast %cst_46 : f32 to vector<3x16xf32>
    %49 = arith.mulf %48, %17 : vector<3x16xf32>
    %cst_47 = arith.constant 3.750000e-01 : f32
    %50 = vector.broadcast %cst_47 : f32 to vector<3x16xf32>
    %51 = arith.mulf %50, %20 : vector<3x16xf32>
    %52 = arith.addf %49, %51 : vector<3x16xf32>
    %53 = arith.addf %47, %52 : vector<3x16xf32>
    %c0_48 = arith.constant 0 : index
    %c0_49 = arith.constant 0 : index
    %c32_50 = arith.constant 32 : index
    %54 = vector.load %arg7[%c0_48, %c0_49, %c32_50] : memref<1x3x256xf32, #tpu.memory_space<vmem>>, vector<1x3x16xf32>
    %55 = vector.shape_cast %54 : vector<1x3x16xf32> to vector<3x16xf32>
    %56 = vector.shape_cast %53 : vector<3x16xf32> to vector<1x3x16xf32>
    tpu.vector_store %arg7[%c0_48, %c0_49, %c32_50], %56 {strides = array<i32>} : memref<1x3x256xf32, #tpu.memory_space<vmem>>, vector<1x3x16xf32>,
    %c0_51 = arith.constant 0 : index
    %c0_52 = arith.constant 0 : index
    %c48 = arith.constant 48 : index
    %57 = vector.load %arg7[%c0_51, %c0_52, %c48] : memref<1x3x256xf32, #tpu.memory_space<vmem>>, vector<1x3x16xf32>
    %58 = vector.shape_cast %57 : vector<1x3x16xf32> to vector<3x16xf32>
    %cst_53 = arith.constant 3.750000e-01 : f32
    %59 = vector.broadcast %cst_53 : f32 to vector<3x16xf32>
    %60 = arith.mulf %59, %20 : vector<3x16xf32>
    %cst_54 = arith.constant 1.250000e-01 : f32
    %61 = vector.broadcast %cst_54 : f32 to vector<3x16xf32>
    %62 = arith.mulf %61, %45 : vector<3x16xf32>
    %63 = arith.addf %60, %62 : vector<3x16xf32>
    %64 = arith.addf %58, %63 : vector<3x16xf32>
    %c0_55 = arith.constant 0 : index
    %c0_56 = arith.constant 0 : index
    %c48_57 = arith.constant 48 : index
    %65 = vector.load %arg7[%c0_55, %c0_56, %c48_57] : memref<1x3x256xf32, #tpu.memory_space<vmem>>, vector<1x3x16xf32>
    %66 = vector.shape_cast %65 : vector<1x3x16xf32> to vector<3x16xf32>
    %67 = vector.shape_cast %64 : vector<3x16xf32> to vector<1x3x16xf32>
    tpu.vector_store %arg7[%c0_55, %c0_56, %c48_57], %67 {strides = array<i32>} : memref<1x3x256xf32, #tpu.memory_space<vmem>>, vector<1x3x16xf32>,
    %c0_58 = arith.constant 0 : index
    %c4 = arith.constant 4 : index
    %c0_59 = arith.constant 0 : index
    %c0_60 = arith.constant 0 : index
    %68 = vector.load %arg6[%c0_58, %c4, %c0_59, %c0_60] : memref<1x10x3x10xf32, #tpu.memory_space<vmem>>, vector<1x1x3x10xf32>
    %69 = vector.shape_cast %68 : vector<1x1x3x10xf32> to vector<3x10xf32>
    %cst_61 = arith.constant dense<0.000000e+00> : vector<3x16xf32>
    %70 = tpu.matmul %69, %11, %cst_61 {dimension_numbers = #tpu.dot_dimension_numbers<[1], [0], [0], [1], [0, 0, 1, 1], [], []>} : vector<3x10xf32>, vector<10x16xf32>, vector<3x16xf32> -> vector<3x16xf32>
    %c0_62 = arith.constant 0 : index
    %c0_63 = arith.constant 0 : index
    %c64 = arith.constant 64 : index
    %71 = vector.load %arg7[%c0_62, %c0_63, %c64] : memref<1x3x256xf32, #tpu.memory_space<vmem>>, vector<1x3x16xf32>
    %72 = vector.shape_cast %71 : vector<1x3x16xf32> to vector<3x16xf32>
    %cst_64 = arith.constant 1.250000e-01 : f32
    %73 = vector.broadcast %cst_64 : f32 to vector<3x16xf32>
    %74 = arith.mulf %73, %20 : vector<3x16xf32>
    %cst_65 = arith.constant 3.750000e-01 : f32
    %75 = vector.broadcast %cst_65 : f32 to vector<3x16xf32>
    %76 = arith.mulf %75, %45 : vector<3x16xf32>
    %77 = arith.addf %74, %76 : vector<3x16xf32>
    %78 = arith.addf %72, %77 : vector<3x16xf32>
    %c0_66 = arith.constant 0 : index
    %c0_67 = arith.constant 0 : index
    %c64_68 = arith.constant 64 : index
    %79 = vector.load %arg7[%c0_66, %c0_67, %c64_68] : memref<1x3x256xf32, #tpu.memory_space<vmem>>, vector<1x3x16xf32>
    %80 = vector.shape_cast %79 : vector<1x3x16xf32> to vector<3x16xf32>
    %81 = vector.shape_cast %78 : vector<3x16xf32> to vector<1x3x16xf32>
    tpu.vector_store %arg7[%c0_66, %c0_67, %c64_68], %81 {strides = array<i32>} : memref<1x3x256xf32, #tpu.memory_space<vmem>>, vector<1x3x16xf32>,
    %c0_69 = arith.constant 0 : index
    %c0_70 = arith.constant 0 : index
    %c80 = arith.constant 80 : index
    %82 = vector.load %arg7[%c0_69, %c0_70, %c80] : memref<1x3x256xf32, #tpu.memory_space<vmem>>, vector<1x3x16xf32>
    %83 = vector.shape_cast %82 : vector<1x3x16xf32> to vector<3x16xf32>
    %cst_71 = arith.constant 3.750000e-01 : f32
    %84 = vector.broadcast %cst_71 : f32 to vector<3x16xf32>
    %85 = arith.mulf %84, %45 : vector<3x16xf32>
    %cst_72 = arith.constant 1.250000e-01 : f32
    %86 = vector.broadcast %cst_72 : f32 to vector<3x16xf32>
    %87 = arith.mulf %86, %70 : vector<3x16xf32>
    %88 = arith.addf %85, %87 : vector<3x16xf32>
    %89 = arith.addf %83, %88 : vector<3x16xf32>
    %c0_73 = arith.constant 0 : index
    %c0_74 = arith.constant 0 : index
    %c80_75 = arith.constant 80 : index
    %90 = vector.load %arg7[%c0_73, %c0_74, %c80_75] : memref<1x3x256xf32, #tpu.memory_space<vmem>>, vector<1x3x16xf32>
    %91 = vector.shape_cast %90 : vector<1x3x16xf32> to vector<3x16xf32>
    %92 = vector.shape_cast %89 : vector<3x16xf32> to vector<1x3x16xf32>
    tpu.vector_store %arg7[%c0_73, %c0_74, %c80_75], %92 {strides = array<i32>} : memref<1x3x256xf32, #tpu.memory_space<vmem>>, vector<1x3x16xf32>,
    %c0_76 = arith.constant 0 : index
    %c5 = arith.constant 5 : index
    %c0_77 = arith.constant 0 : index
    %c0_78 = arith.constant 0 : index
    %93 = vector.load %arg6[%c0_76, %c5, %c0_77, %c0_78] : memref<1x10x3x10xf32, #tpu.memory_space<vmem>>, vector<1x1x3x10xf32>
    %94 = vector.shape_cast %93 : vector<1x1x3x10xf32> to vector<3x10xf32>
    %cst_79 = arith.constant dense<0.000000e+00> : vector<3x16xf32>
    %95 = tpu.matmul %94, %11, %cst_79 {dimension_numbers = #tpu.dot_dimension_numbers<[1], [0], [0], [1], [0, 0, 1, 1], [], []>} : vector<3x10xf32>, vector<10x16xf32>, vector<3x16xf32> -> vector<3x16xf32>
    %c0_80 = arith.constant 0 : index
    %c0_81 = arith.constant 0 : index
    %c96 = arith.constant 96 : index
    %96 = vector.load %arg7[%c0_80, %c0_81, %c96] : memref<1x3x256xf32, #tpu.memory_space<vmem>>, vector<1x3x16xf32>
    %97 = vector.shape_cast %96 : vector<1x3x16xf32> to vector<3x16xf32>
    %cst_82 = arith.constant 1.250000e-01 : f32
    %98 = vector.broadcast %cst_82 : f32 to vector<3x16xf32>
    %99 = arith.mulf %98, %45 : vector<3x16xf32>
    %cst_83 = arith.constant 3.750000e-01 : f32
    %100 = vector.broadcast %cst_83 : f32 to vector<3x16xf32>
    %101 = arith.mulf %100, %70 : vector<3x16xf32>
    %102 = arith.addf %99, %101 : vector<3x16xf32>
    %103 = arith.addf %97, %102 : vector<3x16xf32>
    %c0_84 = arith.constant 0 : index
    %c0_85 = arith.constant 0 : index
    %c96_86 = arith.constant 96 : index
    %104 = vector.load %arg7[%c0_84, %c0_85, %c96_86] : memref<1x3x256xf32, #tpu.memory_space<vmem>>, vector<1x3x16xf32>
    %105 = vector.shape_cast %104 : vector<1x3x16xf32> to vector<3x16xf32>
    %106 = vector.shape_cast %103 : vector<3x16xf32> to vector<1x3x16xf32>
    tpu.vector_store %arg7[%c0_84, %c0_85, %c96_86], %106 {strides = array<i32>} : memref<1x3x256xf32, #tpu.memory_space<vmem>>, vector<1x3x16xf32>,
    %c0_87 = arith.constant 0 : index
    %c0_88 = arith.constant 0 : index
    %c112 = arith.constant 112 : index
    %107 = vector.load %arg7[%c0_87, %c0_88, %c112] : memref<1x3x256xf32, #tpu.memory_space<vmem>>, vector<1x3x16xf32>
    %108 = vector.shape_cast %107 : vector<1x3x16xf32> to vector<3x16xf32>
    %cst_89 = arith.constant 3.750000e-01 : f32
    %109 = vector.broadcast %cst_89 : f32 to vector<3x16xf32>
    %110 = arith.mulf %109, %70 : vector<3x16xf32>
    %cst_90 = arith.constant 1.250000e-01 : f32
    %111 = vector.broadcast %cst_90 : f32 to vector<3x16xf32>
    %112 = arith.mulf %111, %95 : vector<3x16xf32>
    %113 = arith.addf %110, %112 : vector<3x16xf32>
    %114 = arith.addf %108, %113 : vector<3x16xf32>
    %c0_91 = arith.constant 0 : index
    %c0_92 = arith.constant 0 : index
    %c112_93 = arith.constant 112 : index
    %115 = vector.load %arg7[%c0_91, %c0_92, %c112_93] : memref<1x3x256xf32, #tpu.memory_space<vmem>>, vector<1x3x16xf32>
    %116 = vector.shape_cast %115 : vector<1x3x16xf32> to vector<3x16xf32>
    %117 = vector.shape_cast %114 : vector<3x16xf32> to vector<1x3x16xf32>
    tpu.vector_store %arg7[%c0_91, %c0_92, %c112_93], %117 {strides = array<i32>} : memref<1x3x256xf32, #tpu.memory_space<vmem>>, vector<1x3x16xf32>,
    %c0_94 = arith.constant 0 : index
    %c6 = arith.constant 6 : index
    %c0_95 = arith.constant 0 : index
    %c0_96 = arith.constant 0 : index
    %118 = vector.load %arg6[%c0_94, %c6, %c0_95, %c0_96] : memref<1x10x3x10xf32, #tpu.memory_space<vmem>>, vector<1x1x3x10xf32>
    %119 = vector.shape_cast %118 : vector<1x1x3x10xf32> to vector<3x10xf32>
    %cst_97 = arith.constant dense<0.000000e+00> : vector<3x16xf32>
    %120 = tpu.matmul %119, %11, %cst_97 {dimension_numbers = #tpu.dot_dimension_numbers<[1], [0], [0], [1], [0, 0, 1, 1], [], []>} : vector<3x10xf32>, vector<10x16xf32>, vector<3x16xf32> -> vector<3x16xf32>
    %c0_98 = arith.constant 0 : index
    %c0_99 = arith.constant 0 : index
    %c128 = arith.constant 128 : index
    %121 = vector.load %arg7[%c0_98, %c0_99, %c128] : memref<1x3x256xf32, #tpu.memory_space<vmem>>, vector<1x3x16xf32>
    %122 = vector.shape_cast %121 : vector<1x3x16xf32> to vector<3x16xf32>
    %cst_100 = arith.constant 1.250000e-01 : f32
    %123 = vector.broadcast %cst_100 : f32 to vector<3x16xf32>
    %124 = arith.mulf %123, %70 : vector<3x16xf32>
    %cst_101 = arith.constant 3.750000e-01 : f32
    %125 = vector.broadcast %cst_101 : f32 to vector<3x16xf32>
    %126 = arith.mulf %125, %95 : vector<3x16xf32>
    %127 = arith.addf %124, %126 : vector<3x16xf32>
    %128 = arith.addf %122, %127 : vector<3x16xf32>
    %c0_102 = arith.constant 0 : index
    %c0_103 = arith.constant 0 : index
    %c128_104 = arith.constant 128 : index
    %129 = vector.load %arg7[%c0_102, %c0_103, %c128_104] : memref<1x3x256xf32, #tpu.memory_space<vmem>>, vector<1x3x16xf32>
    %130 = vector.shape_cast %129 : vector<1x3x16xf32> to vector<3x16xf32>
    %131 = vector.shape_cast %128 : vector<3x16xf32> to vector<1x3x16xf32>
    tpu.vector_store %arg7[%c0_102, %c0_103, %c128_104], %131 {strides = array<i32>} : memref<1x3x256xf32, #tpu.memory_space<vmem>>, vector<1x3x16xf32>,
    %c0_105 = arith.constant 0 : index
    %c0_106 = arith.constant 0 : index
    %c144 = arith.constant 144 : index
    %132 = vector.load %arg7[%c0_105, %c0_106, %c144] : memref<1x3x256xf32, #tpu.memory_space<vmem>>, vector<1x3x16xf32>
    %133 = vector.shape_cast %132 : vector<1x3x16xf32> to vector<3x16xf32>
    %cst_107 = arith.constant 3.750000e-01 : f32
    %134 = vector.broadcast %cst_107 : f32 to vector<3x16xf32>
    %135 = arith.mulf %134, %95 : vector<3x16xf32>
    %cst_108 = arith.constant 1.250000e-01 : f32
    %136 = vector.broadcast %cst_108 : f32 to vector<3x16xf32>
    %137 = arith.mulf %136, %120 : vector<3x16xf32>
    %138 = arith.addf %135, %137 : vector<3x16xf32>
    %139 = arith.addf %133, %138 : vector<3x16xf32>
    %c0_109 = arith.constant 0 : index
    %c0_110 = arith.constant 0 : index
    %c144_111 = arith.constant 144 : index
    %140 = vector.load %arg7[%c0_109, %c0_110, %c144_111] : memref<1x3x256xf32, #tpu.memory_space<vmem>>, vector<1x3x16xf32>
    %141 = vector.shape_cast %140 : vector<1x3x16xf32> to vector<3x16xf32>
    %142 = vector.shape_cast %139 : vector<3x16xf32> to vector<1x3x16xf32>
    tpu.vector_store %arg7[%c0_109, %c0_110, %c144_111], %142 {strides = array<i32>} : memref<1x3x256xf32, #tpu.memory_space<vmem>>, vector<1x3x16xf32>,
    %c0_112 = arith.constant 0 : index
    %c7 = arith.constant 7 : index
    %c0_113 = arith.constant 0 : index
    %c0_114 = arith.constant 0 : index
    %143 = vector.load %arg6[%c0_112, %c7, %c0_113, %c0_114] : memref<1x10x3x10xf32, #tpu.memory_space<vmem>>, vector<1x1x3x10xf32>
    %144 = vector.shape_cast %143 : vector<1x1x3x10xf32> to vector<3x10xf32>
    %cst_115 = arith.constant dense<0.000000e+00> : vector<3x16xf32>
    %145 = tpu.matmul %144, %11, %cst_115 {dimension_numbers = #tpu.dot_dimension_numbers<[1], [0], [0], [1], [0, 0, 1, 1], [], []>} : vector<3x10xf32>, vector<10x16xf32>, vector<3x16xf32> -> vector<3x16xf32>
    %c0_116 = arith.constant 0 : index
    %c0_117 = arith.constant 0 : index
    %c160 = arith.constant 160 : index
    %146 = vector.load %arg7[%c0_116, %c0_117, %c160] : memref<1x3x256xf32, #tpu.memory_space<vmem>>, vector<1x3x16xf32>
    %147 = vector.shape_cast %146 : vector<1x3x16xf32> to vector<3x16xf32>
    %cst_118 = arith.constant 1.250000e-01 : f32
    %148 = vector.broadcast %cst_118 : f32 to vector<3x16xf32>
    %149 = arith.mulf %148, %95 : vector<3x16xf32>
    %cst_119 = arith.constant 3.750000e-01 : f32
    %150 = vector.broadcast %cst_119 : f32 to vector<3x16xf32>
    %151 = arith.mulf %150, %120 : vector<3x16xf32>
    %152 = arith.addf %149, %151 : vector<3x16xf32>
    %153 = arith.addf %147, %152 : vector<3x16xf32>
    %c0_120 = arith.constant 0 : index
    %c0_121 = arith.constant 0 : index
    %c160_122 = arith.constant 160 : index
    %154 = vector.load %arg7[%c0_120, %c0_121, %c160_122] : memref<1x3x256xf32, #tpu.memory_space<vmem>>, vector<1x3x16xf32>
    %155 = vector.shape_cast %154 : vector<1x3x16xf32> to vector<3x16xf32>
    %156 = vector.shape_cast %153 : vector<3x16xf32> to vector<1x3x16xf32>
    tpu.vector_store %arg7[%c0_120, %c0_121, %c160_122], %156 {strides = array<i32>} : memref<1x3x256xf32, #tpu.memory_space<vmem>>, vector<1x3x16xf32>,
    %c0_123 = arith.constant 0 : index
    %c0_124 = arith.constant 0 : index
    %c176 = arith.constant 176 : index
    %157 = vector.load %arg7[%c0_123, %c0_124, %c176] : memref<1x3x256xf32, #tpu.memory_space<vmem>>, vector<1x3x16xf32>
    %158 = vector.shape_cast %157 : vector<1x3x16xf32> to vector<3x16xf32>
    %cst_125 = arith.constant 3.750000e-01 : f32
    %159 = vector.broadcast %cst_125 : f32 to vector<3x16xf32>
    %160 = arith.mulf %159, %120 : vector<3x16xf32>
    %cst_126 = arith.constant 1.250000e-01 : f32
    %161 = vector.broadcast %cst_126 : f32 to vector<3x16xf32>
    %162 = arith.mulf %161, %145 : vector<3x16xf32>
    %163 = arith.addf %160, %162 : vector<3x16xf32>
    %164 = arith.addf %158, %163 : vector<3x16xf32>
    %c0_127 = arith.constant 0 : index
    %c0_128 = arith.constant 0 : index
    %c176_129 = arith.constant 176 : index
    %165 = vector.load %arg7[%c0_127, %c0_128, %c176_129] : memref<1x3x256xf32, #tpu.memory_space<vmem>>, vector<1x3x16xf32>
    %166 = vector.shape_cast %165 : vector<1x3x16xf32> to vector<3x16xf32>
    %167 = vector.shape_cast %164 : vector<3x16xf32> to vector<1x3x16xf32>
    tpu.vector_store %arg7[%c0_127, %c0_128, %c176_129], %167 {strides = array<i32>} : memref<1x3x256xf32, #tpu.memory_space<vmem>>, vector<1x3x16xf32>,
    %c0_130 = arith.constant 0 : index
    %c8 = arith.constant 8 : index
    %c0_131 = arith.constant 0 : index
    %c0_132 = arith.constant 0 : index
    %168 = vector.load %arg6[%c0_130, %c8, %c0_131, %c0_132] : memref<1x10x3x10xf32, #tpu.memory_space<vmem>>, vector<1x1x3x10xf32>
    %169 = vector.shape_cast %168 : vector<1x1x3x10xf32> to vector<3x10xf32>
    %cst_133 = arith.constant dense<0.000000e+00> : vector<3x16xf32>
    %170 = tpu.matmul %169, %11, %cst_133 {dimension_numbers = #tpu.dot_dimension_numbers<[1], [0], [0], [1], [0, 0, 1, 1], [], []>} : vector<3x10xf32>, vector<10x16xf32>, vector<3x16xf32> -> vector<3x16xf32>
    %c0_134 = arith.constant 0 : index
    %c0_135 = arith.constant 0 : index
    %c192 = arith.constant 192 : index
    %171 = vector.load %arg7[%c0_134, %c0_135, %c192] : memref<1x3x256xf32, #tpu.memory_space<vmem>>, vector<1x3x16xf32>
    %172 = vector.shape_cast %171 : vector<1x3x16xf32> to vector<3x16xf32>
    %cst_136 = arith.constant 1.250000e-01 : f32
    %173 = vector.broadcast %cst_136 : f32 to vector<3x16xf32>
    %174 = arith.mulf %173, %120 : vector<3x16xf32>
    %cst_137 = arith.constant 3.750000e-01 : f32
    %175 = vector.broadcast %cst_137 : f32 to vector<3x16xf32>
    %176 = arith.mulf %175, %145 : vector<3x16xf32>
    %177 = arith.addf %174, %176 : vector<3x16xf32>
    %178 = arith.addf %172, %177 : vector<3x16xf32>
    %c0_138 = arith.constant 0 : index
    %c0_139 = arith.constant 0 : index
    %c192_140 = arith.constant 192 : index
    %179 = vector.load %arg7[%c0_138, %c0_139, %c192_140] : memref<1x3x256xf32, #tpu.memory_space<vmem>>, vector<1x3x16xf32>
    %180 = vector.shape_cast %179 : vector<1x3x16xf32> to vector<3x16xf32>
    %181 = vector.shape_cast %178 : vector<3x16xf32> to vector<1x3x16xf32>
    tpu.vector_store %arg7[%c0_138, %c0_139, %c192_140], %181 {strides = array<i32>} : memref<1x3x256xf32, #tpu.memory_space<vmem>>, vector<1x3x16xf32>,
    %c0_141 = arith.constant 0 : index
    %c0_142 = arith.constant 0 : index
    %c208 = arith.constant 208 : index
    %182 = vector.load %arg7[%c0_141, %c0_142, %c208] : memref<1x3x256xf32, #tpu.memory_space<vmem>>, vector<1x3x16xf32>
    %183 = vector.shape_cast %182 : vector<1x3x16xf32> to vector<3x16xf32>
    %cst_143 = arith.constant 3.750000e-01 : f32
    %184 = vector.broadcast %cst_143 : f32 to vector<3x16xf32>
    %185 = arith.mulf %184, %145 : vector<3x16xf32>
    %cst_144 = arith.constant 1.250000e-01 : f32
    %186 = vector.broadcast %cst_144 : f32 to vector<3x16xf32>
    %187 = arith.mulf %186, %170 : vector<3x16xf32>
    %188 = arith.addf %185, %187 : vector<3x16xf32>
    %189 = arith.addf %183, %188 : vector<3x16xf32>
    %c0_145 = arith.constant 0 : index
    %c0_146 = arith.constant 0 : index
    %c208_147 = arith.constant 208 : index
    %190 = vector.load %arg7[%c0_145, %c0_146, %c208_147] : memref<1x3x256xf32, #tpu.memory_space<vmem>>, vector<1x3x16xf32>
    %191 = vector.shape_cast %190 : vector<1x3x16xf32> to vector<3x16xf32>
    %192 = vector.shape_cast %189 : vector<3x16xf32> to vector<1x3x16xf32>
    tpu.vector_store %arg7[%c0_145, %c0_146, %c208_147], %192 {strides = array<i32>} : memref<1x3x256xf32, #tpu.memory_space<vmem>>, vector<1x3x16xf32>,
    %c0_148 = arith.constant 0 : index
    %c9 = arith.constant 9 : index
    %c0_149 = arith.constant 0 : index
    %c0_150 = arith.constant 0 : index
    %193 = vector.load %arg6[%c0_148, %c9, %c0_149, %c0_150] : memref<1x10x3x10xf32, #tpu.memory_space<vmem>>, vector<1x1x3x10xf32>
    %194 = vector.shape_cast %193 : vector<1x1x3x10xf32> to vector<3x10xf32>
    %cst_151 = arith.constant dense<0.000000e+00> : vector<3x16xf32>
    %195 = tpu.matmul %194, %11, %cst_151 {dimension_numbers = #tpu.dot_dimension_numbers<[1], [0], [0], [1], [0, 0, 1, 1], [], []>} : vector<3x10xf32>, vector<10x16xf32>, vector<3x16xf32> -> vector<3x16xf32>
    %c0_152 = arith.constant 0 : index
    %c0_153 = arith.constant 0 : index
    %c224 = arith.constant 224 : index
    %196 = vector.load %arg7[%c0_152, %c0_153, %c224] : memref<1x3x256xf32, #tpu.memory_space<vmem>>, vector<1x3x16xf32>
    %197 = vector.shape_cast %196 : vector<1x3x16xf32> to vector<3x16xf32>
    %cst_154 = arith.constant 1.250000e-01 : f32
    %198 = vector.broadcast %cst_154 : f32 to vector<3x16xf32>
    %199 = arith.mulf %198, %145 : vector<3x16xf32>
    %cst_155 = arith.constant 3.750000e-01 : f32
    %200 = vector.broadcast %cst_155 : f32 to vector<3x16xf32>
    %201 = arith.mulf %200, %170 : vector<3x16xf32>
    %202 = arith.addf %199, %201 : vector<3x16xf32>
    %203 = arith.addf %197, %202 : vector<3x16xf32>
    %c0_156 = arith.constant 0 : index
    %c0_157 = arith.constant 0 : index
    %c224_158 = arith.constant 224 : index
    %204 = vector.load %arg7[%c0_156, %c0_157, %c224_158] : memref<1x3x256xf32, #tpu.memory_space<vmem>>, vector<1x3x16xf32>
    %205 = vector.shape_cast %204 : vector<1x3x16xf32> to vector<3x16xf32>
    %206 = vector.shape_cast %203 : vector<3x16xf32> to vector<1x3x16xf32>
    tpu.vector_store %arg7[%c0_156, %c0_157, %c224_158], %206 {strides = array<i32>} : memref<1x3x256xf32, #tpu.memory_space<vmem>>, vector<1x3x16xf32>,
    %c0_159 = arith.constant 0 : index
    %c0_160 = arith.constant 0 : index
    %c240 = arith.constant 240 : index
    %207 = vector.load %arg7[%c0_159, %c0_160, %c240] : memref<1x3x256xf32, #tpu.memory_space<vmem>>, vector<1x3x16xf32>
    %208 = vector.shape_cast %207 : vector<1x3x16xf32> to vector<3x16xf32>
    %cst_161 = arith.constant 3.750000e-01 : f32
    %209 = vector.broadcast %cst_161 : f32 to vector<3x16xf32>
    %210 = arith.mulf %209, %170 : vector<3x16xf32>
    %cst_162 = arith.constant 1.250000e-01 : f32
    %211 = vector.broadcast %cst_162 : f32 to vector<3x16xf32>
    %212 = arith.mulf %211, %195 : vector<3x16xf32>
    %213 = arith.addf %210, %212 : vector<3x16xf32>
    %214 = arith.addf %208, %213 : vector<3x16xf32>
    %c0_163 = arith.constant 0 : index
    %c0_164 = arith.constant 0 : index
    %c240_165 = arith.constant 240 : index
    %215 = vector.load %arg7[%c0_163, %c0_164, %c240_165] : memref<1x3x256xf32, #tpu.memory_space<vmem>>, vector<1x3x16xf32>
    %216 = vector.shape_cast %215 : vector<1x3x16xf32> to vector<3x16xf32>
    %217 = vector.shape_cast %214 : vector<3x16xf32> to vector<1x3x16xf32>
    tpu.vector_store %arg7[%c0_163, %c0_164, %c240_165], %217 {strides = array<i32>} : memref<1x3x256xf32, #tpu.memory_space<vmem>>, vector<1x3x16xf32>,
    return
  }
  func.func @transform_0(%arg0: i32, %arg1: i32) -> (i32, i32, i32) {
    %c0_i32 = arith.constant 0 : i32
    %c0_i32_0 = arith.constant 0 : i32
    %c0_i32_1 = arith.constant 0 : i32
    return %arg0, %c0_i32, %c0_i32_0 : i32, i32, i32
  }
  func.func @transform_1(%arg0: i32, %arg1: i32) -> (i32, i32) {
    %c0_i32 = arith.constant 0 : i32
    %c0_i32_0 = arith.constant 0 : i32
    %c0_i32_1 = arith.constant 0 : i32
    return %c0_i32, %c0_i32_0 : i32, i32
  }
  func.func @transform_2(%arg0: i32, %arg1: i32) -> (i32, i32) {
    %c0_i32 = arith.constant 0 : i32
    %c0_i32_0 = arith.constant 0 : i32
    %c0_i32_1 = arith.constant 0 : i32
    return %c0_i32, %c0_i32_0 : i32, i32
  }
  func.func @transform_3(%arg0: i32, %arg1: i32) -> (i32, i32, i32) {
    %c0_i32 = arith.constant 0 : i32
    %c0_i32_0 = arith.constant 0 : i32
    return %arg0, %c0_i32, %arg1 : i32, i32, i32
  }
  func.func @transform_4(%arg0: i32, %arg1: i32) -> (i32, i32, i32, i32) {
    %c0_i32 = arith.constant 0 : i32
    %c0_i32_0 = arith.constant 0 : i32
    %c0_i32_1 = arith.constant 0 : i32
    return %arg0, %arg1, %c0_i32, %c0_i32_0 : i32, i32, i32, i32
  }
  func.func @transform_5(%arg0: i32, %arg1: i32) -> (i32, i32, i32) {
    %c0_i32 = arith.constant 0 : i32
    %c0_i32_0 = arith.constant 0 : i32
    return %arg0, %c0_i32, %arg1 : i32, i32, i32
  }
}

</mosaic_0001>

<llo_original>
// kernel: to_rgb_forward.2
$region0: #{to_rgb_forward.2}
  #allocation0 [shape = 'u32[]', space=smem, size = 0x4, offset = 0x4, fixed_abs, tag = 'smem constant byte address 0x4 - core index']
  #allocation1 [shape = 'u32[72,128]{1,0:T(1,128)}', space=vmem, size = 0x9000, scoped, tag = 'internal scratch']
  %s0 = inlined_call_operand.vmem [shape: f32[2,32], index: 0, kind: input, shape index: {}]
  %s1 = inlined_call_operand.vmem [shape: f32[32,4], index: 1, kind: input, shape index: {}]
  %s2 = inlined_call_operand.vmem [shape: f32[1,4], index: 2, kind: input, shape index: {}]
  %s3 = inlined_call_operand.vmem [shape: f32[3,4], index: 3, kind: input, shape index: {}]
  %s4 = inlined_call_operand.vmem [shape: f32[2,3,4], index: 4, kind: output, shape index: {}]
  %s5 = sld [smem:[#allocation0]]
  $region26: #{to_rgb_forward.2} parent=0
    _
  %s7 = ssub.s32 1, %s5
  %s8 = scalar_select 0, %s7, %s5
  // Predicated region
  $region2: #{to_rgb_forward.2} parent=0 // pred_check
    _
  $region3: #{to_rgb_forward.2} parent=0 // pred_check_branch
    %10 = sbr.rel (0) target = $region5
  $region4: #{to_rgb_forward.2} parent=0 // pred_region
    _
  $region5: #{to_rgb_forward.2} parent=0 // pred_fallthru
    _
  // Predicated region
  $region6: #{to_rgb_forward.2} parent=0 // pred_check
    _
  $region7: #{to_rgb_forward.2} parent=0 // pred_check_branch
    %12 = sbr.rel (0) target = $region9
  $region8: #{to_rgb_forward.2} parent=0 // pred_region
    _
  $region9: #{to_rgb_forward.2} parent=0 // pred_fallthru
    _
  // Predicated region
  $region10: #{to_rgb_forward.2} parent=0 // pred_check
    _
  $region11: #{to_rgb_forward.2} parent=0 // pred_check_branch
    %14 = sbr.rel (0) target = $region13
  $region12: #{to_rgb_forward.2} parent=0 // pred_region
    _
  $region13: #{to_rgb_forward.2} parent=0 // pred_fallthru
    _
  // Predicated region
  $region14: #{to_rgb_forward.2} parent=0 // pred_check
    _
  $region15: #{to_rgb_forward.2} parent=0 // pred_check_branch
    %16 = sbr.rel (0) target = $region17
  $region16: #{to_rgb_forward.2} parent=0 // pred_region
    _
  $region17: #{to_rgb_forward.2} parent=0 // pred_fallthru
    _
  %v17 = vld [vmem:[%s0] sm:$0x3]
  %v18 = vld [vmem:[%s1] sm:$0xff]
  %v19 = vld [vmem:[%s1 + $0x8] sm:$0xff]
  %v20 = vld [vmem:[%s1 + $0x10] sm:$0xff]
  %v21 = vld [vmem:[%s1 + $0x18] sm:$0xff]
  %v22 = vld [vmem:[%s2] sm:$0x1]
  %v24 = vperm.slane %v22, 0
  %vm26 = vcmask 261120
  %v28 = vsel %vm26, %v17, 0
  %30 = vmatpush.msra.mxu0 0.0
  %31 = vmatpush.msra.mxu0 0.0
  %32 = vmatpush.msra.mxu0 0.0
  %33 = vmatpush.msra.mxu0 0.0
  %34 = vmatpush.msra.mxu0 0.0
  %35 = vmatpush.msra.mxu0 0.0
  %36 = vmatpush.msra.mxu0 0.0
  %37 = vmatpush.msra.mxu0 0.0
  %38 = vmatpush.msra.mxu0 0.0
  %39 = vmatpush.msra.mxu0 0.0
  %40 = vmatpush.msra.mxu0 0.0
  %41 = vmatpush.msra.mxu0 0.0
  %42 = vmatpush.msra.mxu0 %v21
  %43 = vmatpush.msra.mxu0 %v20
  %44 = vmatpush.msra.mxu0 %v19
  %45 = vmatpush.msra.mxu0 %v18
  %46 = vmatmul.f32.gmra.mxu0 %v28
  %v47 = vpop.f32.mrf.mxu0
  %v48 = vadd.f32 %v24, %v47
  %49 = vdwg.mxu0
  %v50 = vld [vmem:[%s3] sm:$0x7]
  %v51 = vperm.slane %v48, 0
  %v52 = vmul.f32 %v50, %v51
  %vm53 = vcmask 26624
  %54 = vst.msk [vmem:[%s4] sm:$0x7] %vm53, %v52
  %v55 = vperm.slane %v48, 1
  %v56 = vmul.f32 %v50, %v55
  %s57 = scalar_lea.vmem %s4, 4
  %58 = vst.msk [vmem:[%s57] sm:$0x7] %vm53, %v56
  // Predicated region
  $region18: #{to_rgb_forward.2} parent=0 // pred_check
    _
  $region19: #{to_rgb_forward.2} parent=0 // pred_check_branch
    %60 = sbr.rel (0) target = $region21
  $region20: #{to_rgb_forward.2} parent=0 // pred_region
    _
  $region21: #{to_rgb_forward.2} parent=0 // pred_fallthru
    _
  // Predicated region
  $region22: #{to_rgb_forward.2} parent=0 // pred_check
    _
  $region23: #{to_rgb_forward.2} parent=0 // pred_check_branch
    %62 = sbr.rel (0) target = $region25
  $region24: #{to_rgb_forward.2} parent=0 // pred_region
    _
  $region25: #{to_rgb_forward.2} parent=0 // pred_fallthru
    _

// kernel: to_rgb_forward.3
$region0: #{to_rgb_forward.3}
  #allocation0 [shape = 'u32[]', space=smem, size = 0x4, offset = 0x4, fixed_abs, tag = 'smem constant byte address 0x4 - core index']
  #allocation1 [shape = 'u32[72,128]{1,0:T(1,128)}', space=vmem, size = 0x9000, scoped, tag = 'internal scratch']
  %s0 = inlined_call_operand.vmem [shape: f32[2,3,4], index: 0, kind: input, shape index: {}]
  %s1 = inlined_call_operand.vmem [shape: f32[3,1], index: 1, kind: input, shape index: {}]
  %s2 = inlined_call_operand.vmem [shape: f32[10,16], index: 2, kind: input, shape index: {}]
  %s3 = inlined_call_operand.vmem [shape: f32[2,4,256], index: 3, kind: input, shape index: {}]
  %s4 = inlined_call_operand.vmem [shape: f32[2,10,3,10], index: 4, kind: input, shape index: {}]
  %s5 = inlined_call_operand.vmem [shape: f32[2,3,256], index: 5, kind: output, shape index: {}]
  %s6 = sld [smem:[#allocation0]]
  $region53: #{to_rgb_forward.3} parent=0
    _
  %s8 = ssub.s32 1, %s6
  %s9 = scalar_select 0, %s8, %s6
  loop: start=0, step=1, limit=4
  $region2: #{to_rgb_forward.3} parent=0 // loop_pre_header
    _
  $region3: #{to_rgb_forward.3} parent=0 // loop_header
    %s11 = sphi 0, %s15
    %p12 = scmp.ge.s32.totalorder %s11, 4
    %s18 = sphi 0, %s30
    %s19 = sphi 0, %s26
    %s20 = sphi 0, %s18
    %s21 = sphi 0, %s19
    %s22 = sphi 0, %s20
    %s23 = sphi 0, %s21
    %s33 = sphi 0, %s35
    %s36 = sphi 0, %s33
    %s37 = sphi 0, %s36
    %s53 = sphi 0, %s37
    %s57 = sphi 0, %s57
    %s59 = sphi 0, %s57
    %s60 = sphi 0, %s59
    %s74 = sphi 0, %s60
    %s78 = sphi 0, %s78
    %s80 = sphi 0, %s78
    %s81 = sphi 0, %s80
    %s95 = sphi 0, %s81
    %s103 = sphi 0, %s105
    %s106 = sphi 0, %s103
    %s107 = sphi 0, %s106
    %s123 = sphi 0, %s107
    %s131 = sphi 0, %s133
    %s134 = sphi 0, %s131
    %s135 = sphi 0, %s134
    %s151 = sphi 0, %s135
    %s159 = sphi 0, %s161
    %s162 = sphi 0, %s159
    %s163 = sphi 0, %s162
    %s179 = sphi 0, %s163
  $region4: #{to_rgb_forward.3} parent=0 // loop_header_branch
    %14 = sbr.rel (%p12) target = $region8
  $region5: #{to_rgb_forward.3} parent=0 // loop_body
    %s16 = ssub.s32 %s11, 1
    %s17 = ssub.s32 %s11, 2
    %s24 = sadd.s32 1, %s19
    %p25 = scmp.ge.s32.totalorder %s24, 1
    %s26 = scalar_select %p25, 0, %s24
    %s27 = sadd.s32 1, %s18
    %s28 = scalar_select %p25, %s27, %s18
    %p29 = scmp.ge.s32.totalorder %s28, 2
    %s30 = scalar_select %p29, 0, %s28
    %s31 = ssub.s32 %s18, %s30
    %p32 = scmp.eq.s32.totalorder %s31, 0
    %s34 = sadd.s32 %s33, 1
    %s35 = scalar_select %p32, %s33, %s34
    %p38 = pneg %p32
    %p39 = scmp.eq.s32.totalorder %s11, 1
    %p40 = por %p38, %p39
    %p41 = scmp.ne.s32.totalorder %s33, %s36
    %p42 = scmp.eq.s32.totalorder %s11, 0
    %p43 = por %p41, %p42
    %p44 = scmp.ne.s32.totalorder %s33, %s36
    %p45 = scmp.eq.s32.totalorder %s16, 1
    %p46 = por %p44, %p45
    %p47 = scmp.ne.s32.totalorder %s36, %s37
    %p48 = scmp.eq.s32.totalorder %s16, 0
    %p49 = por %p47, %p48
    %p50 = scmp.ne.s32.totalorder %s36, %s37
    %p51 = scmp.eq.s32.totalorder %s17, 1
    %p52 = por %p50, %p51
    %p54 = scmp.ne.s32.totalorder %s37, %s53
    %p55 = scmp.eq.s32.totalorder %s17, 0
    %p56 = por %p54, %p55
    %s58 = sadd.s32 %s57, 1
    %p61 = scmp.eq.s32.totalorder %s11, 1
    %p62 = scmp.ne.s32.totalorder %s57, %s59
    %p63 = scmp.eq.s32.totalorder %s11, 0
    %p64 = por %p62, %p63
    %p65 = scmp.ne.s32.totalorder %s57, %s59
    %p66 = scmp.eq.s32.totalorder %s16, 1
    %p67 = por %p65, %p66
    %p68 = scmp.ne.s32.totalorder %s59, %s60
    %p69 = scmp.eq.s32.totalorder %s16, 0
    %p70 = por %p68, %p69
    %p71 = scmp.ne.s32.totalorder %s59, %s60
    %p72 = scmp.eq.s32.totalorder %s17, 1
    %p73 = por %p71, %p72
    %p75 = scmp.ne.s32.totalorder %s60, %s74
    %p76 = scmp.eq.s32.totalorder %s17, 0
    %p77 = por %p75, %p76
    %s79 = sadd.s32 %s78, 1
    %p82 = scmp.eq.s32.totalorder %s11, 1
    %p83 = scmp.ne.s32.totalorder %s78, %s80
    %p84 = scmp.eq.s32.totalorder %s11, 0
    %p85 = por %p83, %p84
    %p86 = scmp.ne.s32.totalorder %s78, %s80
    %p87 = scmp.eq.s32.totalorder %s16, 1
    %p88 = por %p86, %p87
    %p89 = scmp.ne.s32.totalorder %s80, %s81
    %p90 = scmp.eq.s32.totalorder %s16, 0
    %p91 = por %p89, %p90
    %p92 = scmp.ne.s32.totalorder %s80, %s81
    %p93 = scmp.eq.s32.totalorder %s17, 1
    %p94 = por %p92, %p93
    %p96 = scmp.ne.s32.totalorder %s81, %s95
    %p97 = scmp.eq.s32.totalorder %s17, 0
    %p98 = por %p96, %p97
    %s99 = ssub.s32 %s18, %s30
    %s100 = ssub.s32 %s19, %s26
    %s101 = sor.u32 %s99, %s100
    %p102 = scmp.eq.s32.totalorder %s101, 0
    %s104 = sadd.s32 %s103, 1
    %s105 = scalar_select %p102, %s103, %s104
    %p108 = pneg %p102
    %p109 = scmp.eq.s32.totalorder %s11, 1
    %p110 = por %p108, %p109
    %p111 = scmp.ne.s32.totalorder %s103, %s106
    %p112 = scmp.eq.s32.totalorder %s11, 0
    %p113 = por %p111, %p112
    %p114 = scmp.ne.s32.totalorder %s103, %s106
    %p115 = scmp.eq.s32.totalorder %s16, 1
    %p116 = por %p114, %p115
    %p117 = scmp.ne.s32.totalorder %s106, %s107
    %p118 = scmp.eq.s32.totalorder %s16, 0
    %p119 = por %p117, %p118
    %p120 = scmp.ne.s32.totalorder %s106, %s107
    %p121 = scmp.eq.s32.totalorder %s17, 1
    %p122 = por %p120, %p121
    %p124 = scmp.ne.s32.totalorder %s107, %s123
    %p125 = scmp.eq.s32.totalorder %s17, 0
    %p126 = por %p124, %p125
    %s127 = ssub.s32 %s18, %s30
    %s128 = ssub.s32 %s19, %s26
    %s129 = sor.u32 %s127, %s128
    %p130 = scmp.eq.s32.totalorder %s129, 0
    %s132 = sadd.s32 %s131, 1
    %s133 = scalar_select %p130, %s131, %s132
    %p136 = pneg %p130
    %p137 = scmp.eq.s32.totalorder %s11, 1
    %p138 = por %p136, %p137
    %p139 = scmp.ne.s32.totalorder %s131, %s134
    %p140 = scmp.eq.s32.totalorder %s11, 0
    %p141 = por %p139, %p140
    %p142 = scmp.ne.s32.totalorder %s131, %s134
    %p143 = scmp.eq.s32.totalorder %s16, 1
    %p144 = por %p142, %p143
    %p145 = scmp.ne.s32.totalorder %s134, %s135
    %p146 = scmp.eq.s32.totalorder %s16, 0
    %p147 = por %p145, %p146
    %p148 = scmp.ne.s32.totalorder %s134, %s135
    %p149 = scmp.eq.s32.totalorder %s17, 1
    %p150 = por %p148, %p149
    %p152 = scmp.ne.s32.totalorder %s135, %s151
    %p153 = scmp.eq.s32.totalorder %s17, 0
    %p154 = por %p152, %p153
    %s155 = ssub.s32 %s18, %s30
    %s156 = ssub.s32 %s19, %s26
    %s157 = sor.u32 %s155, %s156
    %p158 = scmp.eq.s32.totalorder %s157, 0
    %s160 = sadd.s32 %s159, 1
    %s161 = scalar_select %p158, %s159, %s160
    %p164 = pneg %p158
    %p165 = scmp.eq.s32.totalorder %s11, 1
    %p166 = por %p164, %p165
    %p167 = scmp.ne.s32.totalorder %s159, %s162
    %p168 = scmp.eq.s32.totalorder %s11, 0
    %p169 = por %p167, %p168
    %p170 = scmp.ne.s32.totalorder %s159, %s162
    %p171 = scmp.eq.s32.totalorder %s16, 1
    %p172 = por %p170, %p171
    %p173 = scmp.ne.s32.totalorder %s162, %s163
    %p174 = scmp.eq.s32.totalorder %s16, 0
    %p175 = por %p173, %p174
    %p176 = scmp.ne.s32.totalorder %s162, %s163
    %p177 = scmp.eq.s32.totalorder %s17, 1
    %p178 = por %p176, %p177
    %p180 = scmp.ne.s32.totalorder %s163, %s179
    %p181 = scmp.eq.s32.totalorder %s17, 0
    %p182 = por %p180, %p181
    %p183 = scmp.le.s32.totalorder 1, %s11
    %p184 = scmp.lt.s32.totalorder %s11, 3
    %p185 = pnand %p183, %p184
    %p186 = pneg %p185
    // Predicated region
    $region9: #{to_rgb_forward.3} parent=5 // pred_check
      _
    $region10: #{to_rgb_forward.3} parent=5 // pred_check_branch
      %188 = sbr.rel (%p185) target = $region12
    $region11: #{to_rgb_forward.3} parent=5 // pred_region
      %s189 = ssub.s32 %s11, 1
      // Predicated region
      $region13: #{to_rgb_forward.3} parent=11 // pred_check
        %p190 = pneg %p70
      $region14: #{to_rgb_forward.3} parent=11 // pred_check_branch
        %192 = sbr.rel (%p190) target = $region16
      $region15: #{to_rgb_forward.3} parent=11 // pred_region
        _
      $region16: #{to_rgb_forward.3} parent=11 // pred_fallthru
        _
      // Predicated region
      $region17: #{to_rgb_forward.3} parent=11 // pred_check
        %p193 = pneg %p91
      $region18: #{to_rgb_forward.3} parent=11 // pred_check_branch
        %195 = sbr.rel (%p193) target = $region20
      $region19: #{to_rgb_forward.3} parent=11 // pred_region
        _
      $region20: #{to_rgb_forward.3} parent=11 // pred_fallthru
        _
    $region12: #{to_rgb_forward.3} parent=5 // pred_fallthru
      _
    %p196 = scmp.lt.s32.totalorder %s11, 2
    // Predicated region
    $region21: #{to_rgb_forward.3} parent=5 // pred_check
      %p197 = pneg %p196
    $region22: #{to_rgb_forward.3} parent=5 // pred_check_branch
      %199 = sbr.rel (%p197) target = $region24
    $region23: #{to_rgb_forward.3} parent=5 // pred_region
      // Predicated region
      $region25: #{to_rgb_forward.3} parent=23 // pred_check
        %p200 = pneg %p43
      $region26: #{to_rgb_forward.3} parent=23 // pred_check_branch
        %202 = sbr.rel (%p200) target = $region28
      $region27: #{to_rgb_forward.3} parent=23 // pred_region
        %p203 = scmp.lt.s32.totalorder %s18, 1
        %s204 = scalar_select %p203, %s18, 1
        %s205 = smul.addr %s204, 4
        %s206 = scalar_lea.vmem %s0, %s205
      $region28: #{to_rgb_forward.3} parent=23 // pred_fallthru
        _
      // Predicated region
      $region29: #{to_rgb_forward.3} parent=23 // pred_check
        %p207 = pneg %p113
      $region30: #{to_rgb_forward.3} parent=23 // pred_check_branch
        %209 = sbr.rel (%p207) target = $region32
      $region31: #{to_rgb_forward.3} parent=23 // pred_region
        %s210 = smul.u32 2, %s19
        %p211 = scmp.lt.s32.totalorder %s18, 1
        %s212 = scalar_select %p211, %s18, 1
        %p213 = scmp.lt.s32.totalorder %s210, 1
        %s214 = scalar_select %p213, %s210, 1
        %s215 = smul.addr %s212, 2
        %s216 = sadd.s32 %s214, %s215
        %s217 = smul.addr %s216, 4
        %s218 = scalar_lea.vmem %s3, %s217
        %s219 = smul.u32 2, %s19
      $region32: #{to_rgb_forward.3} parent=23 // pred_fallthru
        _
      // Predicated region
      $region33: #{to_rgb_forward.3} parent=23 // pred_check
        %p220 = pneg %p141
      $region34: #{to_rgb_forward.3} parent=23 // pred_check_branch
        %222 = sbr.rel (%p220) target = $region36
      $region35: #{to_rgb_forward.3} parent=23 // pred_region
        %s223 = smul.u32 10, %s19
        %p224 = scmp.lt.s32.totalorder %s18, 1
        %s225 = scalar_select %p224, %s18, 1
        %p226 = scmp.lt.s32.totalorder %s223, 9
        %s227 = scalar_select %p226, %s223, 9
        %s228 = smul.addr %s225, 10
        %s229 = sadd.s32 %s227, %s228
        %s230 = smul.addr %s229, 4
        %s231 = scalar_lea.vmem %s4, %s230
        %s232 = smul.u32 10, %s19
      $region36: #{to_rgb_forward.3} parent=23 // pred_fallthru
        _
    $region24: #{to_rgb_forward.3} parent=5 // pred_fallthru
      _
    %p233 = scmp.le.s32.totalorder 1, %s11
    %p234 = scmp.lt.s32.totalorder %s11, 3
    %p235 = pnand %p233, %p234
    %p236 = pneg %p235
    // Predicated region
    $region37: #{to_rgb_forward.3} parent=5 // pred_check
      _
    $region38: #{to_rgb_forward.3} parent=5 // pred_check_branch
      %238 = sbr.rel (%p235) target = $region40
    $region39: #{to_rgb_forward.3} parent=5 // pred_region
      %s239 = ssub.s32 %s11, 1
      %p240 = scmp.lt.s32.totalorder %s20, 1
      %s241 = scalar_select %p240, %s20, 1
      %s242 = smul.addr %s241, 4
      %s243 = scalar_lea.vmem %s0, %s242
      %p244 = pneg %p49
      %p245 = pneg %p46
      %p246 = pneg %p70
      %p247 = pneg %p67
      %p248 = pneg %p91
      %p249 = pneg %p88
      %s250 = smul.u32 2, %s21
      %p251 = scmp.lt.s32.totalorder %s20, 1
      %s252 = scalar_select %p251, %s20, 1
      %p253 = scmp.lt.s32.totalorder %s250, 1
      %s254 = scalar_select %p253, %s250, 1
      %s255 = smul.addr %s252, 2
      %s256 = sadd.s32 %s254, %s255
      %s257 = smul.addr %s256, 4
      %s258 = scalar_lea.vmem %s3, %s257
      %p259 = pneg %p119
      %p260 = pneg %p116
      %s261 = smul.u32 10, %s21
      %p262 = scmp.lt.s32.totalorder %s20, 1
      %s263 = scalar_select %p262, %s20, 1
      %p264 = scmp.lt.s32.totalorder %s261, 9
      %s265 = scalar_select %p264, %s261, 9
      %s266 = smul.addr %s263, 10
      %s267 = sadd.s32 %s265, %s266
      %s268 = smul.addr %s267, 4
      %s269 = scalar_lea.vmem %s4, %s268
      %p270 = pneg %p147
      %p271 = pneg %p144
      %p272 = pneg %p175
      %p273 = pneg %p172
      %s274 = smul.u32 2, %s21
      %p275 = scmp.lt.s32.totalorder %s20, 1
      %s276 = scalar_select %p275, %s20, 1
      %p277 = scmp.lt.s32.totalorder %s274, 1
      %s278 = scalar_select %p277, %s274, 1
      %s279 = smul.addr %s276, 2
      %s280 = sadd.s32 %s278, %s279
      %s281 = smul.addr %s280, 4
      %s282 = scalar_lea.vmem %s5, %s281
      %p283 = scmp.lt.s32.totalorder %s20, 1
      %s284 = scalar_select %p283, %s20, 1
      %s285 = smul.addr %s284, 4
      %s286 = scalar_lea.vmem %s0, %s285
      %s287 = smul.u32 2, %s21
      %p288 = scmp.lt.s32.totalorder %s20, 1
      %s289 = scalar_select %p288, %s20, 1
      %p290 = scmp.lt.s32.totalorder %s287, 1
      %s291 = scalar_select %p290, %s287, 1
      %s292 = smul.addr %s289, 2
      %s293 = sadd.s32 %s291, %s292
      %s294 = smul.addr %s293, 4
      %s295 = scalar_lea.vmem %s3, %s294
      %s296 = smul.u32 2, %s21
      %s297 = smul.u32 10, %s21
      %p298 = scmp.lt.s32.totalorder %s20, 1
      %s299 = scalar_select %p298, %s20, 1
      %p300 = scmp.lt.s32.totalorder %s297, 9
      %s301 = scalar_select %p300, %s297, 9
      %s302 = smul.addr %s299, 10
      %s303 = sadd.s32 %s301, %s302
      %s304 = smul.addr %s303, 4
      %s305 = scalar_lea.vmem %s4, %s304
      %s306 = smul.u32 10, %s21
      %s307 = smul.u32 2, %s21
      %p308 = scmp.lt.s32.totalorder %s20, 1
      %s309 = scalar_select %p308, %s20, 1
      %p310 = scmp.lt.s32.totalorder %s307, 1
      %s311 = scalar_select %p310, %s307, 1
      %s312 = smul.addr %s309, 2
      %s313 = sadd.s32 %s311, %s312
      %s314 = smul.addr %s313, 4
      %s315 = scalar_lea.vmem %s5, %s314
      %s316 = smul.u32 2, %s21
      %v317 = vld [vmem:[%s286] sm:$0x7]
      %v318 = vld [vmem:[%s295] sm:$0xff]
      %v319 = vld [vmem:[%s1] sm:$0x7]
      %321 = vset.pattern.permute.xlu0 0
      %322 = vperm.xlu0 %321, %v319
      %v323 = vpop.permute.xlu0 %322
      %326 = vst [vmem:[#allocation1] ss:$2 sm:$0xff] %v318
      %v327 = vld.sshfl [vmem:[#allocation1] sm:$0xff pattern:$0x75316420]
      %v328 = vld.sshfl [vmem:[#allocation1 + $0x8] sm:$0xff pattern:$0x75316420]
      %vm329 = vcmask 31744
      %v331 = vsel %vm329, %v317, 0
      %vm333 = vcmask 1043456
      %v334 = vsel %vm333, %v327, 0
      %v336 = vsel %vm333, %v328, 0
      %338 = vmatpush.msra.mxu0 0.0
      %339 = vmatpush.msra.mxu0 0.0
      %340 = vmatpush.msra.mxu0 0.0
      %341 = vmatpush.msra.mxu0 0.0
      %342 = vmatpush.msra.mxu0 0.0
      %343 = vmatpush.msra.mxu0 0.0
      %344 = vmatpush.msra.mxu0 0.0
      %345 = vmatpush.msra.mxu0 0.0
      %346 = vmatpush.msra.mxu0 0.0
      %347 = vmatpush.msra.mxu0 0.0
      %348 = vmatpush.msra.mxu0 0.0
      %349 = vmatpush.msra.mxu0 0.0
      %350 = vmatpush.msra.mxu0 0.0
      %351 = vmatpush.msra.mxu0 0.0
      %352 = vmatpush.msra.mxu0 0.0
      %353 = vmatpush.msra.mxu0 %v334
      %354 = vmatmul.f32.gmra.mxu0 %v331
      %v355 = vpop.f32.mrf.mxu0
      %v356 = vadd.f32 %v323, %v355
      %357 = vdwg.mxu0
      %358 = vmatpush.msra.mxu0 0.0
      %359 = vmatpush.msra.mxu0 0.0
      %360 = vmatpush.msra.mxu0 0.0
      %361 = vmatpush.msra.mxu0 0.0
      %362 = vmatpush.msra.mxu0 0.0
      %363 = vmatpush.msra.mxu0 0.0
      %364 = vmatpush.msra.mxu0 0.0
      %365 = vmatpush.msra.mxu0 0.0
      %366 = vmatpush.msra.mxu0 0.0
      %367 = vmatpush.msra.mxu0 0.0
      %368 = vmatpush.msra.mxu0 0.0
      %369 = vmatpush.msra.mxu0 0.0
      %370 = vmatpush.msra.mxu0 0.0
      %371 = vmatpush.msra.mxu0 0.0
      %372 = vmatpush.msra.mxu0 0.0
      %373 = vmatpush.msra.mxu0 %v336
      %374 = vmatmul.f32.gmra.mxu0 %v331
      %v375 = vpop.f32.mrf.mxu0
      %v376 = vadd.f32 %v323, %v375
      %377 = vdwg.mxu0
      %v380 = vrot.slane %v376, 4
      %v381 = vsel %vm333, %v356, %v380
      %383 = vst [vmem:[%s315] sm:$0x77] %v381
      %v384 = vld [vmem:[%s2] sm:$0xff]
      %v385 = vld [vmem:[%s2 + $0x8] sm:$0x3]
      %v386 = vld [vmem:[%s305] sm:$0x7]
      %vm387 = vcmask 80896
      %v389 = vsel %vm387, %v386, 0
      %vm391 = vcmask 1041408
      %v393 = vsel %vm391, %v385, 0
      %395 = vmatpush.msra.mxu0 0.0
      %396 = vmatpush.msra.mxu0 0.0
      %397 = vmatpush.msra.mxu0 0.0
      %398 = vmatpush.msra.mxu0 0.0
      %399 = vmatpush.msra.mxu0 0.0
      %400 = vmatpush.msra.mxu0 0.0
      %401 = vmatpush.msra.mxu0 0.0
      %402 = vmatpush.msra.mxu0 0.0
      %403 = vmatpush.msra.mxu0 0.0
      %404 = vmatpush.msra.mxu0 0.0
      %405 = vmatpush.msra.mxu0 0.0
      %406 = vmatpush.msra.mxu0 0.0
      %407 = vmatpush.msra.mxu0 0.0
      %408 = vmatpush.msra.mxu0 0.0
      %409 = vmatpush.msra.mxu0 %v393
      %410 = vmatpush.msra.mxu0 %v384
      %411 = vmatmul.f32.gmra.mxu0 %v389
      %v412 = vpop.f32.mrf.mxu0
      %v413 = vadd.f32 0.0, %v412
      %414 = vdwg.mxu0
      %s415 = scalar_lea.vmem %s305, 4
      %v416 = vld [vmem:[%s415] sm:$0x7]
      %v418 = vsel %vm387, %v416, 0
      %420 = vmatpush.msra.mxu0 0.0
      %421 = vmatpush.msra.mxu0 0.0
      %422 = vmatpush.msra.mxu0 0.0
      %423 = vmatpush.msra.mxu0 0.0
      %424 = vmatpush.msra.mxu0 0.0
      %425 = vmatpush.msra.mxu0 0.0
      %426 = vmatpush.msra.mxu0 0.0
      %427 = vmatpush.msra.mxu0 0.0
      %428 = vmatpush.msra.mxu0 0.0
      %429 = vmatpush.msra.mxu0 0.0
      %430 = vmatpush.msra.mxu0 0.0
      %431 = vmatpush.msra.mxu0 0.0
      %432 = vmatpush.msra.mxu0 0.0
      %433 = vmatpush.msra.mxu0 0.0
      %434 = vmatpush.msra.mxu0 %v393
      %435 = vmatpush.msra.mxu0 %v384
      %436 = vmatmul.f32.gmra.mxu0 %v418
      %v437 = vpop.f32.mrf.mxu0
      %v438 = vadd.f32 0.0, %v437
      %439 = vdwg.mxu0
      %s440 = scalar_lea.vmem %s305, 8
      %v441 = vld [vmem:[%s440] sm:$0x7]
      %v443 = vsel %vm387, %v441, 0
      %445 = vmatpush.msra.mxu0 0.0
      %446 = vmatpush.msra.mxu0 0.0
      %447 = vmatpush.msra.mxu0 0.0
      %448 = vmatpush.msra.mxu0 0.0
      %449 = vmatpush.msra.mxu0 0.0
      %450 = vmatpush.msra.mxu0 0.0
      %451 = vmatpush.msra.mxu0 0.0
      %452 = vmatpush.msra.mxu0 0.0
      %453 = vmatpush.msra.mxu0 0.0
      %454 = vmatpush.msra.mxu0 0.0
      %455 = vmatpush.msra.mxu0 0.0
      %456 = vmatpush.msra.mxu0 0.0
      %457 = vmatpush.msra.mxu0 0.0
      %458 = vmatpush.msra.mxu0 0.0
      %459 = vmatpush.msra.mxu0 %v393
      %460 = vmatpush.msra.mxu0 %v384
      %461 = vmatmul.f32.gmra.mxu0 %v443
      %v462 = vpop.f32.mrf.mxu0
      %v463 = vadd.f32 0.0, %v462
      %464 = vdwg.mxu0
      %v465 = vld [vmem:[%s315] sm:$0x7]
      %v466 = vmul.f32 %v413, 0.125
      %v467 = vmul.f32 %v438, 0.375
      %v468 = vadd.f32 %v466, %v467
      %v469 = vadd.f32 %v465, %v468
      %vm470 = vcmask 124928
      %471 = vst.msk [vmem:[%s315] sm:$0x7] %vm470, %v469
      %v472 = vld [vmem:[%s315] sm:$0x7]
      %v473 = vmul.f32 %v463, 0.125
      %v474 = vadd.f32 %v467, %v473
      %476 = vrot.lane.b32.xlu0 %v474, 16
      %v477 = vpop.permute.xlu0 %476
      %v479 = vadd.f32 %v472, %v477
      %vm480 = vcmask 256128
      %481 = vst.msk [vmem:[%s315] sm:$0x7] %vm480, %v479
      %s482 = scalar_lea.vmem %s305, 12
      %v483 = vld [vmem:[%s482] sm:$0x7]
      %v485 = vsel %vm387, %v483, 0
      %487 = vmatpush.msra.mxu0 0.0
      %488 = vmatpush.msra.mxu0 0.0
      %489 = vmatpush.msra.mxu0 0.0
      %490 = vmatpush.msra.mxu0 0.0
      %491 = vmatpush.msra.mxu0 0.0
      %492 = vmatpush.msra.mxu0 0.0
      %493 = vmatpush.msra.mxu0 0.0
      %494 = vmatpush.msra.mxu0 0.0
      %495 = vmatpush.msra.mxu0 0.0
      %496 = vmatpush.msra.mxu0 0.0
      %497 = vmatpush.msra.mxu0 0.0
      %498 = vmatpush.msra.mxu0 0.0
      %499 = vmatpush.msra.mxu0 0.0
      %500 = vmatpush.msra.mxu0 0.0
      %501 = vmatpush.msra.mxu0 %v393
      %502 = vmatpush.msra.mxu0 %v384
      %503 = vmatmul.f32.gmra.mxu0 %v485
      %v504 = vpop.f32.mrf.mxu0
      %v505 = vadd.f32 0.0, %v504
      %506 = vdwg.mxu0
      %v507 = vld [vmem:[%s315] sm:$0x7]
      %v508 = vmul.f32 %v438, 0.125
      %v509 = vmul.f32 %v463, 0.375
      %v510 = vadd.f32 %v508, %v509
      %512 = vrot.lane.b32.xlu0 %v510, 32
      %v513 = vpop.permute.xlu0 %512
      %v515 = vadd.f32 %v507, %v513
      %vm516 = vcmask 387328
      %517 = vst.msk [vmem:[%s315] sm:$0x7] %vm516, %v515
      %v518 = vld [vmem:[%s315] sm:$0x7]
      %v519 = vmul.f32 %v505, 0.125
      %v520 = vadd.f32 %v509, %v519
      %522 = vrot.lane.b32.xlu0 %v520, 48
      %v523 = vpop.permute.xlu0 %522
      %v525 = vadd.f32 %v518, %v523
      %vm526 = vcmask 518528
      %527 = vst.msk [vmem:[%s315] sm:$0x7] %vm526, %v525
      %s528 = scalar_lea.vmem %s305, 16
      %v529 = vld [vmem:[%s528] sm:$0x7]
      %v531 = vsel %vm387, %v529, 0
      %533 = vmatpush.msra.mxu0 0.0
      %534 = vmatpush.msra.mxu0 0.0
      %535 = vmatpush.msra.mxu0 0.0
      %536 = vmatpush.msra.mxu0 0.0
      %537 = vmatpush.msra.mxu0 0.0
      %538 = vmatpush.msra.mxu0 0.0
      %539 = vmatpush.msra.mxu0 0.0
      %540 = vmatpush.msra.mxu0 0.0
      %541 = vmatpush.msra.mxu0 0.0
      %542 = vmatpush.msra.mxu0 0.0
      %543 = vmatpush.msra.mxu0 0.0
      %544 = vmatpush.msra.mxu0 0.0
      %545 = vmatpush.msra.mxu0 0.0
      %546 = vmatpush.msra.mxu0 0.0
      %547 = vmatpush.msra.mxu0 %v393
      %548 = vmatpush.msra.mxu0 %v384
      %549 = vmatmul.f32.gmra.mxu0 %v531
      %v550 = vpop.f32.mrf.mxu0
      %v551 = vadd.f32 0.0, %v550
      %552 = vdwg.mxu0
      %v553 = vld [vmem:[%s315] sm:$0x7]
      %v554 = vmul.f32 %v505, 0.375
      %v555 = vadd.f32 %v473, %v554
      %557 = vrot.lane.b32.xlu0 %v555, 64
      %v558 = vpop.permute.xlu0 %557
      %v560 = vadd.f32 %v553, %v558
      %vm561 = vcmask 649728
      %562 = vst.msk [vmem:[%s315] sm:$0x7] %vm561, %v560
      %v563 = vld [vmem:[%s315] sm:$0x7]
      %v564 = vmul.f32 %v551, 0.125
      %v565 = vadd.f32 %v554, %v564
      %567 = vrot.lane.b32.xlu0 %v565, 80
      %v568 = vpop.permute.xlu0 %567
      %v570 = vadd.f32 %v563, %v568
      %vm571 = vcmask 780928
      %572 = vst.msk [vmem:[%s315] sm:$0x7] %vm571, %v570
      %s573 = scalar_lea.vmem %s305, 20
      %v574 = vld [vmem:[%s573] sm:$0x7]
      %v576 = vsel %vm387, %v574, 0
      %578 = vmatpush.msra.mxu0 0.0
      %579 = vmatpush.msra.mxu0 0.0
      %580 = vmatpush.msra.mxu0 0.0
      %581 = vmatpush.msra.mxu0 0.0
      %582 = vmatpush.msra.mxu0 0.0
      %583 = vmatpush.msra.mxu0 0.0
      %584 = vmatpush.msra.mxu0 0.0
      %585 = vmatpush.msra.mxu0 0.0
      %586 = vmatpush.msra.mxu0 0.0
      %587 = vmatpush.msra.mxu0 0.0
      %588 = vmatpush.msra.mxu0 0.0
      %589 = vmatpush.msra.mxu0 0.0
      %590 = vmatpush.msra.mxu0 0.0
      %591 = vmatpush.msra.mxu0 0.0
      %592 = vmatpush.msra.mxu0 %v393
      %593 = vmatpush.msra.mxu0 %v384
      %594 = vmatmul.f32.gmra.mxu0 %v576
      %v595 = vpop.f32.mrf.mxu0
      %v596 = vadd.f32 0.0, %v595
      %597 = vdwg.mxu0
      %v598 = vld [vmem:[%s315] sm:$0x7]
      %v599 = vmul.f32 %v551, 0.375
      %v600 = vadd.f32 %v519, %v599
      %602 = vrot.lane.b32.xlu0 %v600, 96
      %v603 = vpop.permute.xlu0 %602
      %v605 = vadd.f32 %v598, %v603
      %vm606 = vcmask 912128
      %607 = vst.msk [vmem:[%s315] sm:$0x7] %vm606, %v605
      %v608 = vld [vmem:[%s315] sm:$0x7]
      %v609 = vmul.f32 %v596, 0.125
      %v610 = vadd.f32 %v599, %v609
      %612 = vrot.lane.b32.xlu0 %v610, 112
      %v613 = vpop.permute.xlu0 %612
      %v615 = vadd.f32 %v608, %v613
      %vm616 = vcmask 1043328
      %617 = vst.msk [vmem:[%s315] sm:$0x7] %vm616, %v615
      %s618 = scalar_lea.vmem %s305, 24
      %v619 = vld [vmem:[%s618] sm:$0x7]
      %v621 = vsel %vm387, %v619, 0
      %623 = vmatpush.msra.mxu0 0.0
      %624 = vmatpush.msra.mxu0 0.0
      %625 = vmatpush.msra.mxu0 0.0
      %626 = vmatpush.msra.mxu0 0.0
      %627 = vmatpush.msra.mxu0 0.0
      %628 = vmatpush.msra.mxu0 0.0
      %629 = vmatpush.msra.mxu0 0.0
      %630 = vmatpush.msra.mxu0 0.0
      %631 = vmatpush.msra.mxu0 0.0
      %632 = vmatpush.msra.mxu0 0.0
      %633 = vmatpush.msra.mxu0 0.0
      %634 = vmatpush.msra.mxu0 0.0
      %635 = vmatpush.msra.mxu0 0.0
      %636 = vmatpush.msra.mxu0 0.0
      %637 = vmatpush.msra.mxu0 %v393
      %638 = vmatpush.msra.mxu0 %v384
      %639 = vmatmul.f32.gmra.mxu0 %v621
      %v640 = vpop.f32.mrf.mxu0
      %v641 = vadd.f32 0.0, %v640
      %642 = vdwg.mxu0
      %v643 = vld [vmem:[%s315 + $0x4] sm:$0x7]
      %v644 = vmul.f32 %v596, 0.375
      %v645 = vadd.f32 %v564, %v644
      %v646 = vadd.f32 %v643, %v645
      %647 = vst.msk [vmem:[%s315 + $0x4] sm:$0x7] %vm470, %v646
      %v648 = vld [vmem:[%s315 + $0x4] sm:$0x7]
      %v649 = vmul.f32 %v641, 0.125
      %v650 = vadd.f32 %v644, %v649
      %652 = vrot.lane.b32.xlu0 %v650, 16
      %v653 = vpop.permute.xlu0 %652
      %v655 = vadd.f32 %v648, %v653
      %656 = vst.msk [vmem:[%s315 + $0x4] sm:$0x7] %vm480, %v655
      %s657 = scalar_lea.vmem %s305, 28
      %v658 = vld [vmem:[%s657] sm:$0x7]
      %v660 = vsel %vm387, %v658, 0
      %662 = vmatpush.msra.mxu0 0.0
      %663 = vmatpush.msra.mxu0 0.0
      %664 = vmatpush.msra.mxu0 0.0
      %665 = vmatpush.msra.mxu0 0.0
      %666 = vmatpush.msra.mxu0 0.0
      %667 = vmatpush.msra.mxu0 0.0
      %668 = vmatpush.msra.mxu0 0.0
      %669 = vmatpush.msra.mxu0 0.0
      %670 = vmatpush.msra.mxu0 0.0
      %671 = vmatpush.msra.mxu0 0.0
      %672 = vmatpush.msra.mxu0 0.0
      %673 = vmatpush.msra.mxu0 0.0
      %674 = vmatpush.msra.mxu0 0.0
      %675 = vmatpush.msra.mxu0 0.0
      %676 = vmatpush.msra.mxu0 %v393
      %677 = vmatpush.msra.mxu0 %v384
      %678 = vmatmul.f32.gmra.mxu0 %v660
      %v679 = vpop.f32.mrf.mxu0
      %v680 = vadd.f32 0.0, %v679
      %681 = vdwg.mxu0
      %v682 = vld [vmem:[%s315 + $0x4] sm:$0x7]
      %v683 = vmul.f32 %v641, 0.375
      %v684 = vadd.f32 %v609, %v683
      %686 = vrot.lane.b32.xlu0 %v684, 32
      %v687 = vpop.permute.xlu0 %686
      %v689 = vadd.f32 %v682, %v687
      %690 = vst.msk [vmem:[%s315 + $0x4] sm:$0x7] %vm516, %v689
      %v691 = vld [vmem:[%s315 + $0x4] sm:$0x7]
      %v692 = vmul.f32 %v680, 0.125
      %v693 = vadd.f32 %v683, %v692
      %695 = vrot.lane.b32.xlu0 %v693, 48
      %v696 = vpop.permute.xlu0 %695
      %v698 = vadd.f32 %v691, %v696
      %699 = vst.msk [vmem:[%s315 + $0x4] sm:$0x7] %vm526, %v698
      %s700 = scalar_lea.vmem %s305, 32
      %v701 = vld [vmem:[%s700] sm:$0x7]
      %v703 = vsel %vm387, %v701, 0
      %705 = vmatpush.msra.mxu0 0.0
      %706 = vmatpush.msra.mxu0 0.0
      %707 = vmatpush.msra.mxu0 0.0
      %708 = vmatpush.msra.mxu0 0.0
      %709 = vmatpush.msra.mxu0 0.0
      %710 = vmatpush.msra.mxu0 0.0
      %711 = vmatpush.msra.mxu0 0.0
      %712 = vmatpush.msra.mxu0 0.0
      %713 = vmatpush.msra.mxu0 0.0
      %714 = vmatpush.msra.mxu0 0.0
      %715 = vmatpush.msra.mxu0 0.0
      %716 = vmatpush.msra.mxu0 0.0
      %717 = vmatpush.msra.mxu0 0.0
      %718 = vmatpush.msra.mxu0 0.0
      %719 = vmatpush.msra.mxu0 %v393
      %720 = vmatpush.msra.mxu0 %v384
      %721 = vmatmul.f32.gmra.mxu0 %v703
      %v722 = vpop.f32.mrf.mxu0
      %v723 = vadd.f32 0.0, %v722
      %724 = vdwg.mxu0
      %v725 = vld [vmem:[%s315 + $0x4] sm:$0x7]
      %v726 = vmul.f32 %v680, 0.375
      %v727 = vadd.f32 %v649, %v726
      %729 = vrot.lane.b32.xlu0 %v727, 64
      %v730 = vpop.permute.xlu0 %729
      %v732 = vadd.f32 %v725, %v730
      %733 = vst.msk [vmem:[%s315 + $0x4] sm:$0x7] %vm561, %v732
      %v734 = vld [vmem:[%s315 + $0x4] sm:$0x7]
      %v735 = vmul.f32 %v723, 0.125
      %v736 = vadd.f32 %v726, %v735
      %738 = vrot.lane.b32.xlu0 %v736, 80
      %v739 = vpop.permute.xlu0 %738
      %v741 = vadd.f32 %v734, %v739
      %742 = vst.msk [vmem:[%s315 + $0x4] sm:$0x7] %vm571, %v741
      %s743 = scalar_lea.vmem %s305, 36
      %v744 = vld [vmem:[%s743] sm:$0x7]
      %v746 = vsel %vm387, %v744, 0
      %748 = vmatpush.msra.mxu0 0.0
      %749 = vmatpush.msra.mxu0 0.0
      %750 = vmatpush.msra.mxu0 0.0
      %751 = vmatpush.msra.mxu0 0.0
      %752 = vmatpush.msra.mxu0 0.0
      %753 = vmatpush.msra.mxu0 0.0
      %754 = vmatpush.msra.mxu0 0.0
      %755 = vmatpush.msra.mxu0 0.0
      %756 = vmatpush.msra.mxu0 0.0
      %757 = vmatpush.msra.mxu0 0.0
      %758 = vmatpush.msra.mxu0 0.0
      %759 = vmatpush.msra.mxu0 0.0
      %760 = vmatpush.msra.mxu0 0.0
      %761 = vmatpush.msra.mxu0 0.0
      %762 = vmatpush.msra.mxu0 %v393
      %763 = vmatpush.msra.mxu0 %v384
      %764 = vmatmul.f32.gmra.mxu0 %v746
      %v765 = vpop.f32.mrf.mxu0
      %v766 = vadd.f32 0.0, %v765
      %767 = vdwg.mxu0
      %v768 = vld [vmem:[%s315 + $0x4] sm:$0x7]
      %v769 = vmul.f32 %v723, 0.375
      %v770 = vadd.f32 %v692, %v769
      %772 = vrot.lane.b32.xlu0 %v770, 96
      %v773 = vpop.permute.xlu0 %772
      %v775 = vadd.f32 %v768, %v773
      %776 = vst.msk [vmem:[%s315 + $0x4] sm:$0x7] %vm606, %v775
      %v777 = vld [vmem:[%s315 + $0x4] sm:$0x7]
      %v778 = vmul.f32 %v766, 0.125
      %v779 = vadd.f32 %v769, %v778
      %781 = vrot.lane.b32.xlu0 %v779, 112
      %v782 = vpop.permute.xlu0 %781
      %v784 = vadd.f32 %v777, %v782
      %785 = vst.msk [vmem:[%s315 + $0x4] sm:$0x7] %vm616, %v784
      %s786 = smul.u32 2, %s21
      %p787 = scmp.lt.s32.totalorder %s20, 1
      %s788 = scalar_select %p787, %s20, 1
      %p789 = scmp.lt.s32.totalorder %s786, 1
      %s790 = scalar_select %p789, %s786, 1
      %s791 = smul.addr %s788, 2
      %s792 = sadd.s32 %s790, %s791
      %s793 = smul.addr %s792, 4
      %s794 = scalar_lea.vmem %s5, %s793
      // Predicated region
      $region41: #{to_rgb_forward.3} parent=39 // pred_check
        %p795 = pneg %p172
      $region42: #{to_rgb_forward.3} parent=39 // pred_check_branch
        %797 = sbr.rel (%p795) target = $region44
      $region43: #{to_rgb_forward.3} parent=39 // pred_region
        %s798 = smul.u32 2, %s21
      $region44: #{to_rgb_forward.3} parent=39 // pred_fallthru
        _
    $region40: #{to_rgb_forward.3} parent=5 // pred_fallthru
      _
    %p799 = scmp.le.s32.totalorder 2, %s11
    // Predicated region
    $region45: #{to_rgb_forward.3} parent=5 // pred_check
      %p800 = pneg %p799
    $region46: #{to_rgb_forward.3} parent=5 // pred_check_branch
      %802 = sbr.rel (%p800) target = $region48
    $region47: #{to_rgb_forward.3} parent=5 // pred_region
      %s803 = ssub.s32 %s11, 2
      // Predicated region
      $region49: #{to_rgb_forward.3} parent=47 // pred_check
        %p804 = pneg %p178
      $region50: #{to_rgb_forward.3} parent=47 // pred_check_branch
        %806 = sbr.rel (%p804) target = $region52
      $region51: #{to_rgb_forward.3} parent=47 // pred_region
        %s807 = smul.u32 2, %s23
        %p808 = scmp.lt.s32.totalorder %s22, 1
        %s809 = scalar_select %p808, %s22, 1
        %p810 = scmp.lt.s32.totalorder %s807, 1
        %s811 = scalar_select %p810, %s807, 1
        %s812 = smul.addr %s809, 2
        %s813 = sadd.s32 %s811, %s812
        %s814 = smul.addr %s813, 4
        %s815 = scalar_lea.vmem %s5, %s814
      $region52: #{to_rgb_forward.3} parent=47 // pred_fallthru
        _
    $region48: #{to_rgb_forward.3} parent=5 // pred_fallthru
      _
  $region6: #{to_rgb_forward.3} parent=0 // loop_footer
    %s15 = sadd.s32 1, %s11
  $region7: #{to_rgb_forward.3} parent=0 // loop_footer_branch
    %10 = sbr.rel target = $region3
  $region8: #{to_rgb_forward.3} parent=0 // loop_exit
    _

</llo_original>
